<compile_context>
chip_gen: v5e
topology: v5e:2x2
jax: 0.10.0
libtpu: 0.0.40
codegen_flags: <defaults>
</compile_context>

<pallas_src>
import functools

import jax
import jax.numpy as jnp
from jax.experimental import pallas as pl
from jax.experimental.pallas import tpu as pltpu

BN_EPS = 1e-5


def _round_up(v, m):
    return (v + m - 1) // m * m


def _default_vmem_limit():
    # Generation-aware budget: 128 MiB parts (v5e/v6e) get ~70% of VMEM,
    # 64 MiB parts (v7x) get a conservative ~45%.
    try:
        cap = pltpu.get_tpu_info().vmem_capacity_bytes
        frac = 0.70 if cap >= 100 * 1024 * 1024 else 0.45
        return max(16 * 1024 * 1024, int(cap * frac))
    except Exception:
        return 32 * 1024 * 1024


VMEM_LIMIT = _default_vmem_limit()


# ----------------------------- Pallas kernels ------------------------------

def _conv_bn_relu_pool_kernel(x_ref, w_ref, s_ref, b_ref, o_ref, acc_ref,
                              *, NB, H, Wq, W_out, P):
    # x_ref : (NB, P, Hp=H+3, Wq, cin_t) bf16 -- padded input planes (P=2 => even/odd cols)
    # w_ref : (9, cin_t, cout_t)         bf16 -- 3x3 taps, tap index t = 3*dy + dx
    # s_ref, b_ref : (1, cout_t)         f32  -- folded BN scale / bias
    # o_ref : (NB, H, W_out, cout_t)          -- output tile
    # acc_ref: (P, NB*H*Wq, cout_t)      f32  -- per-parity accumulator (reduced over Cin tiles)
    ci = pl.program_id(2)
    cin_t = x_ref.shape[-1]
    rows_len = (H + 1) * Wq
    m = H * Wq

    @pl.when(ci == 0)
    def _init():
        acc_ref[...] = jnp.zeros_like(acc_ref)

    for dy in range(3):
        # Column shift applied to the bf16 operand (not the f32 product): build at most
        # 2*P shifted (NB*m, cin_t) views per dy, deduped and reused across taps.
        views = {}
        for src in range(P):
            base = x_ref[:, src, dy:dy + H + 1].reshape(NB, rows_len, cin_t)
            qoffs = sorted({(r + dx) // P for r in range(P) for dx in range(3)
                            if (r + dx) % P == src})
            for qoff in qoffs:
                views[(src, qoff)] = base[:, qoff:qoff + m].reshape(NB * m, cin_t)
        for r in range(P):
            partial = None
            for dx in range(3):
                src, qoff = (r + dx) % P, (r + dx) // P
                z = jnp.dot(views[(src, qoff)], w_ref[3 * dy + dx],
                            preferred_element_type=jnp.float32)
                partial = z if partial is None else partial + z
            # Per-dy read-modify-write keeps accumulator live ranges short
            # (3 RMWs/plane/step; also friendly to v5e's single vector-store slot).
            acc_ref[r] = acc_ref[r] + partial

    @pl.when(ci == pl.num_programs(2) - 1)
    def _finalize():
        s = s_ref[...]
        b = b_ref[...]
        y = jnp.maximum(acc_ref[0] * s + b, 0.0)
        if P == 2:
            # MaxPool2d((1, 2)): elementwise max of the two column-parity planes.
            y = jnp.maximum(y, jnp.maximum(acc_ref[1] * s + b, 0.0))
        y = y.reshape(NB, H, Wq, -1)[:, :, :W_out, :]
        o_ref[...] = y.astype(o_ref.dtype)


def _linear_kernel(x_ref, w_ref, b_ref, o_ref, acc_ref, *, relu):
    # x_ref: (N, f_t) bf16   w_ref: (f_t, o_t) bf16   b_ref: (1, o_t) f32
    # o_ref: (N, o_t)        acc_ref: (N, o_t) f32
    f = pl.program_id(1)

    @pl.when(f == 0)
    def _init():
        acc_ref[...] = jnp.zeros_like(acc_ref)

    acc_ref[...] += jnp.dot(x_ref[...], w_ref[...],
                            preferred_element_type=jnp.float32)

    @pl.when(f == pl.num_programs(1) - 1)
    def _finalize():
        y = acc_ref[...] + b_ref[...]
        if relu:
            y = jnp.maximum(y, 0.0)
        o_ref[...] = y.astype(o_ref.dtype)


# ------------------------------ layer wrappers ------------------------------

def conv_bn_relu(x, w9, scale, bias, pool):
    """3x3 conv (pad=1) + folded BN + ReLU + optional MaxPool2d((1,2)). NHWC bf16."""
    N, H, W, Cin = x.shape
    _, Cin_p, Cout = w9.shape
    cpad = Cin_p - Cin
    Hp = H + 3  # pad H by (1, 2) so all in-kernel tap slices stay in bounds

    x = x.astype(jnp.bfloat16)
    if pool:
        assert W % 2 == 0, "MaxPool2d((1,2)) requires an even width"
        P, W_out = 2, W // 2
        Wq = _round_up(W_out + 1, 16)       # 16: bf16 sublane packing
        xp = jnp.pad(x, ((0, 0), (1, 2), (1, 1), (0, cpad)))       # (N,Hp,W+2,Cin_p)
        planes = jnp.stack([xp[:, :, 0::2, :], xp[:, :, 1::2, :]], axis=1)
        planes = jnp.pad(planes,
                         ((0, 0), (0, 0), (0, 0), (0, Wq - (W_out + 1)), (0, 0)))
    else:
        P, W_out = 1, W
        Wq = _round_up(W + 2, 16)
        planes = jnp.pad(x, ((0, 0), (1, 2), (1, Wq - W - 1), (0, cpad)))[:, None]
    # shifted reads for kept output columns never wrap into the next row
    assert Wq >= W_out + (2 if P == 1 else 1)

    cin_t = min(Cin_p, 256)                 # MXU-native K depth
    n_ci = Cin_p // cin_t

    # Tile selection: largest cout tile / batch block that fits the VMEM budget.
    budget = int(VMEM_LIMIT * 0.8)

    def est(nb, co):
        inp = 2 * nb * P * Hp * Wq * cin_t * 2          # double-buffered input block
        wgt = 2 * 9 * cin_t * co * 2                    # double-buffered weight block
        outb = 2 * nb * H * W_out * co * 2              # double-buffered output block
        acc = P * nb * H * Wq * co * 4                  # accumulator scratch
        tmp = 3 * nb * (H + 1) * Wq * cin_t * 2 + 2 * nb * H * Wq * co * 4  # headroom
        return inp + wgt + outb + acc + tmp

    cout_opts = [Cout] if Cout <= 256 else [c for c in (512, 256) if Cout % c == 0]
    nb_opts = [d for d in range(min(N, 8), 0, -1) if N % d == 0]
    cout_t, NB = cout_opts[-1], 1
    found = False
    for co in cout_opts:                     # prefer full Cout (fewer input re-reads)
        for nb in nb_opts:                   # then the largest batch block (weight amortization)
            if est(nb, co) <= budget:
                cout_t, NB = co, nb
                found = True
                break
        if found:
            break
    n_co = Cout // cout_t
    if N // NB == 1 and n_co == 1 and N > 1 and Cout <= 256:
        # Keep a >=2-extent parallel grid axis (v7x has 2 TensorCores per chip);
        # cheap here since these layers have small weight tensors.
        NB = max(d for d in nb_opts if N // d >= 2)

    out = pl.pallas_call(
        functools.partial(_conv_bn_relu_pool_kernel,
                          NB=NB, H=H, Wq=Wq, W_out=W_out, P=P),
        out_shape=jax.ShapeDtypeStruct((N, H, W_out, Cout), jnp.bfloat16),
        grid=(N // NB, n_co, n_ci),
        in_specs=[
            pl.BlockSpec((NB, P, Hp, Wq, cin_t), lambda n, co, ci: (n, 0, 0, 0, ci)),
            pl.BlockSpec((9, cin_t, cout_t), lambda n, co, ci: (0, ci, co)),
            pl.BlockSpec((1, cout_t), lambda n, co, ci: (0, co)),
            pl.BlockSpec((1, cout_t), lambda n, co, ci: (0, co)),
        ],
        out_specs=pl.BlockSpec((NB, H, W_out, cout_t), lambda n, co, ci: (n, 0, 0, co)),
        scratch_shapes=[pltpu.VMEM((P, NB * H * Wq, cout_t), jnp.float32)],
        compiler_params=pltpu.CompilerParams(
            dimension_semantics=("parallel", "parallel", "arbitrary"),
            vmem_limit_bytes=VMEM_LIMIT,
        ),
    )(planes, w9, scale, bias)
    return out


def linear(x, w, b, relu):
    """Weight-streaming tiled matmul: x (N,F) bf16 @ w (F,O) bf16 + b, optional ReLU."""
    N, F = x.shape
    _, O = w.shape

    def pick(dim, cands):
        for c in cands:
            if dim % c == 0:
                return c
        return dim  # all F/O in this model are multiples of 128 by construction

    # >=2 MiB bf16 weight blocks so DMA dominates the ~0.35 us per-grid-step overhead.
    o_t = pick(O, [1024, 512, 256, 128])
    f_t = pick(F, [2048, 1536, 1024, 512, 256, 128])
    while 2 * f_t * o_t * 2 > VMEM_LIMIT // 2 and f_t > 128 and F % (f_t // 2) == 0:
        f_t //= 2                              # keep double-buffered weights within budget
    out_dtype = jnp.bfloat16 if relu else jnp.float32   # bf16 hidden activations directly

    return pl.pallas_call(
        functools.partial(_linear_kernel, relu=relu),
        out_shape=jax.ShapeDtypeStruct((N, O), out_dtype),
        grid=(O // o_t, F // f_t),
        in_specs=[
            pl.BlockSpec((N, f_t), lambda o, f: (0, f)),
            pl.BlockSpec((f_t, o_t), lambda o, f: (f, o)),
            pl.BlockSpec((1, o_t), lambda o, f: (0, o)),
        ],
        out_specs=pl.BlockSpec((N, o_t), lambda o, f: (0, o)),
        scratch_shapes=[pltpu.VMEM((N, o_t), jnp.float32)],
        compiler_params=pltpu.CompilerParams(
            dimension_semantics=("parallel", "arbitrary"),
            vmem_limit_bytes=VMEM_LIMIT,
        ),
    )(x, w, b)


# ------------------------------ parameter init ------------------------------

# (in_channels, out_channels, pool) for the 13 vgg_block convs (tail, after the first).
CONV_CFG_TAIL = [
    (64, 64, True),
    (64, 128, False), (128, 128, True),
    (128, 256, False), (256, 256, False), (256, 256, True),
    (256, 512, False), (512, 512, False), (512, 512, True),
    (512, 512, False), (512, 512, False), (512, 512, True),
]


def init_params(key, in_channels, num_classes, H, W):
    conv_cfg = [(in_channels, 64, False)] + CONV_CFG_TAIL
    convs = []
    for cin, cout, pool in conv_cfg:
        key, k1, k2 = jax.random.split(key, 3)
        fan_in = 9 * cin
        w = jax.random.normal(k1, (3, 3, cin, cout), jnp.float32) * (2.0 / fan_in) ** 0.5
        cin_p = _round_up(cin, 16)            # pad tiny Cin (first layer) to bf16 tile minimum
        w = jnp.pad(w, ((0, 0), (0, 0), (0, cin_p - cin), (0, 0)))
        w9 = w.reshape(9, cin_p, cout).astype(jnp.bfloat16)
        b_conv = jax.random.normal(k2, (cout,), jnp.float32) * 0.01
        # Eval-mode BatchNorm (gamma=1, beta=0, mean=0, var=1) folded with the conv bias.
        s = jnp.ones((cout,), jnp.float32) / jnp.sqrt(1.0 + BN_EPS)
        bias = s * b_conv
        convs.append((w9, s.reshape(1, cout), bias.reshape(1, cout), pool))

    # Final conv feature map (NHWC): H x (W // 32) x 512
    Hf, Wf, Cf = H, W // 32, 512
    feat = Hf * Wf * Cf
    fc_cfg = [(feat, 1024, True), (1024, 1024, True),
              (1024, 400, True), (400, num_classes, False)]
    fcs = []
    for li, (fin, fout, relu) in enumerate(fc_cfg):
        key, k1, k2 = jax.random.split(key, 3)
        w = jax.random.normal(k1, (fin, fout), jnp.float32) * (2.0 / fin) ** 0.5
        b = jax.random.normal(k2, (fout,), jnp.float32) * 0.01
        if li == 0:
            # Permute rows from PyTorch's NCHW flatten order to this code's NHWC
            # flatten order so no runtime transpose of the feature map is needed.
            perm = jnp.arange(feat).reshape(Cf, Hf, Wf).transpose(1, 2, 0).reshape(-1)
            w = w[perm]
        fin_p = _round_up(fin, 128)
        fout_p = _round_up(fout, 128)   # lane-dense outputs; extra cols are exact zeros
        w = jnp.pad(w, ((0, fin_p - fin), (0, fout_p - fout)))
        b = jnp.pad(b, (0, fout_p - fout))
        fcs.append((w.astype(jnp.bfloat16), b.reshape(1, fout_p).astype(jnp.float32), relu))
    return convs, fcs


# -------------------------------- forward -----------------------------------

def vgg16_forward(x_nchw, convs, fcs, num_classes):
    x = jnp.transpose(x_nchw, (0, 2, 3, 1)).astype(jnp.bfloat16)  # NCHW -> NHWC
    for w9, scale, bias, pool in convs:
        x = conv_bn_relu(x, w9, scale, bias, pool)
    N = x.shape[0]
    out = x.reshape(N, -1)   # NHWC flatten (first FC weight rows pre-permuted to match)
    for w, b, relu in fcs:
        out = linear(out, w, b, relu)     # bf16 hidden activations, f32 final logits
    return out[:, :num_classes]


if __name__ == "__main__":
    key = jax.random.PRNGKey(0)
    kx, kp = jax.random.split(key)

    # Small test shape: W must be divisible by 32 (five MaxPool2d((1,2)) stages).
    N, C, H, W = 2, 3, 4, 32
    num_classes = 10
    assert W % 32 == 0

    x = jax.random.normal(kx, (N, C, H, W), jnp.float32)
    convs, fcs = init_params(kp, C, num_classes, H, W)

    out = vgg16_forward(x, convs, fcs, num_classes)
    out = jax.block_until_ready(out)
    assert out.shape == (N, num_classes), out.shape
    assert bool(jnp.all(jnp.isfinite(out.astype(jnp.float32))))
    print("KERNEL_OK")
</pallas_src>

<mosaic_0001>
module attributes {stable_mosaic.version = 11 : i64} {
  func.func @_conv_bn_relu_pool_kernel(%arg0: i32, %arg1: i32, %arg2: i32, %arg3: memref<1x1x7x48x16xbf16, #tpu.memory_space<vmem>>, %arg4: memref<9x16x64xbf16, #tpu.memory_space<vmem>>, %arg5: memref<1x64xf32, #tpu.memory_space<vmem>>, %arg6: memref<1x64xf32, #tpu.memory_space<vmem>>, %arg7: memref<1x4x32x64xbf16, #tpu.memory_space<vmem>>, %arg8: memref<1x192x64xf32, #tpu.memory_space<vmem>>) attributes {dimension_semantics = [#tpu.dimension_semantics<parallel>, #tpu.dimension_semantics<parallel>, #tpu.dimension_semantics<arbitrary>], iteration_bounds = array<i64: 2, 1, 1>, scalar_prefetch = 0 : i64, scratch_operands = 1 : i64, tpu.core_type = #tpu.core_type<tc>, window_params = [{transform_indices = @transform_0, window_bounds = array<i64: 1, 1, 7, 48, 16>}, {transform_indices = @transform_1, window_bounds = array<i64: 9, 16, 64>}, {transform_indices = @transform_2, window_bounds = array<i64: 1, 64>}, {transform_indices = @transform_3, window_bounds = array<i64: 1, 64>}, {transform_indices = @transform_4, window_bounds = array<i64: 1, 4, 32, 64>}]} {
    %c0_i32 = arith.constant 0 : i32
    %0 = arith.cmpi eq, %arg2, %c0_i32 : i32
    %1 = arith.extui %0 : i1 to i32
    %c0_i32_0 = arith.constant 0 : i32
    %2 = arith.cmpi ne, %1, %c0_i32_0 : i32
    scf.if %2 {
      %cst_62 = arith.constant 0.000000e+00 : f32
      %84 = vector.broadcast %cst_62 : f32 to vector<1x192x64xf32>
      %c0_63 = arith.constant 0 : index
      %c0_64 = arith.constant 0 : index
      %c0_65 = arith.constant 0 : index
      %85 = vector.load %arg8[%c0_63, %c0_64, %c0_65] : memref<1x192x64xf32, #tpu.memory_space<vmem>>, vector<1x192x64xf32>
      tpu.vector_store %arg8[%c0_63, %c0_64, %c0_65], %84 {strides = array<i32>} : memref<1x192x64xf32, #tpu.memory_space<vmem>>, vector<1x192x64xf32>,
    } else {
    }
    %c0 = arith.constant 0 : index
    %c0_1 = arith.constant 0 : index
    %c0_2 = arith.constant 0 : index
    %c0_3 = arith.constant 0 : index
    %c0_4 = arith.constant 0 : index
    %3 = vector.load %arg3[%c0, %c0_1, %c0_2, %c0_3, %c0_4] : memref<1x1x7x48x16xbf16, #tpu.memory_space<vmem>>, vector<1x1x5x48x16xbf16>
    %4 = vector.shape_cast %3 : vector<1x1x5x48x16xbf16> to vector<1x5x48x16xbf16>
    %5 = vector.shape_cast %4 : vector<1x5x48x16xbf16> to vector<1x240x16xbf16>
    %6 = vector.extract_strided_slice %5 {offsets = [0, 0, 0], sizes = [1, 192, 16], strides = [1, 1, 1]} : vector<1x240x16xbf16> to vector<1x192x16xbf16>
    %7 = vector.shape_cast %6 : vector<1x192x16xbf16> to vector<192x16xbf16>
    %8 = vector.extract_strided_slice %5 {offsets = [0, 1, 0], sizes = [1, 192, 16], strides = [1, 1, 1]} : vector<1x240x16xbf16> to vector<1x192x16xbf16>
    %9 = vector.shape_cast %8 : vector<1x192x16xbf16> to vector<192x16xbf16>
    %10 = vector.extract_strided_slice %5 {offsets = [0, 2, 0], sizes = [1, 192, 16], strides = [1, 1, 1]} : vector<1x240x16xbf16> to vector<1x192x16xbf16>
    %11 = vector.shape_cast %10 : vector<1x192x16xbf16> to vector<192x16xbf16>
    %c0_5 = arith.constant 0 : index
    %c0_6 = arith.constant 0 : index
    %c0_7 = arith.constant 0 : index
    %12 = vector.load %arg4[%c0_5, %c0_6, %c0_7] : memref<9x16x64xbf16, #tpu.memory_space<vmem>>, vector<1x16x64xbf16>
    %13 = vector.shape_cast %12 : vector<1x16x64xbf16> to vector<16x64xbf16>
    %cst = arith.constant dense<0.000000e+00> : vector<192x64xf32>
    %14 = tpu.matmul %7, %13, %cst {dimension_numbers = #tpu.dot_dimension_numbers<[1], [0], [0], [1], [0, 0, 1, 1], [], []>} : vector<192x16xbf16>, vector<16x64xbf16>, vector<192x64xf32> -> vector<192x64xf32>
    %c1 = arith.constant 1 : index
    %c0_8 = arith.constant 0 : index
    %c0_9 = arith.constant 0 : index
    %15 = vector.load %arg4[%c1, %c0_8, %c0_9] : memref<9x16x64xbf16, #tpu.memory_space<vmem>>, vector<1x16x64xbf16>
    %16 = vector.shape_cast %15 : vector<1x16x64xbf16> to vector<16x64xbf16>
    %cst_10 = arith.constant dense<0.000000e+00> : vector<192x64xf32>
    %17 = tpu.matmul %9, %16, %cst_10 {dimension_numbers = #tpu.dot_dimension_numbers<[1], [0], [0], [1], [0, 0, 1, 1], [], []>} : vector<192x16xbf16>, vector<16x64xbf16>, vector<192x64xf32> -> vector<192x64xf32>
    %18 = arith.addf %14, %17 : vector<192x64xf32>
    %c2 = arith.constant 2 : index
    %c0_11 = arith.constant 0 : index
    %c0_12 = arith.constant 0 : index
    %19 = vector.load %arg4[%c2, %c0_11, %c0_12] : memref<9x16x64xbf16, #tpu.memory_space<vmem>>, vector<1x16x64xbf16>
    %20 = vector.shape_cast %19 : vector<1x16x64xbf16> to vector<16x64xbf16>
    %cst_13 = arith.constant dense<0.000000e+00> : vector<192x64xf32>
    %21 = tpu.matmul %11, %20, %cst_13 {dimension_numbers = #tpu.dot_dimension_numbers<[1], [0], [0], [1], [0, 0, 1, 1], [], []>} : vector<192x16xbf16>, vector<16x64xbf16>, vector<192x64xf32> -> vector<192x64xf32>
    %22 = arith.addf %18, %21 : vector<192x64xf32>
    %c0_14 = arith.constant 0 : index
    %c0_15 = arith.constant 0 : index
    %c0_16 = arith.constant 0 : index
    %23 = vector.load %arg8[%c0_14, %c0_15, %c0_16] : memref<1x192x64xf32, #tpu.memory_space<vmem>>, vector<1x192x64xf32>
    %24 = vector.shape_cast %23 : vector<1x192x64xf32> to vector<192x64xf32>
    %25 = arith.addf %24, %22 : vector<192x64xf32>
    %c0_17 = arith.constant 0 : index
    %c0_18 = arith.constant 0 : index
    %c0_19 = arith.constant 0 : index
    %26 = vector.load %arg8[%c0_17, %c0_18, %c0_19] : memref<1x192x64xf32, #tpu.memory_space<vmem>>, vector<1x192x64xf32>
    %27 = vector.shape_cast %26 : vector<1x192x64xf32> to vector<192x64xf32>
    %28 = vector.shape_cast %25 : vector<192x64xf32> to vector<1x192x64xf32>
    tpu.vector_store %arg8[%c0_17, %c0_18, %c0_19], %28 {strides = array<i32>} : memref<1x192x64xf32, #tpu.memory_space<vmem>>, vector<1x192x64xf32>,
    %c0_20 = arith.constant 0 : index
    %c0_21 = arith.constant 0 : index
    %c1_22 = arith.constant 1 : index
    %c0_23 = arith.constant 0 : index
    %c0_24 = arith.constant 0 : index
    %29 = vector.load %arg3[%c0_20, %c0_21, %c1_22, %c0_23, %c0_24] : memref<1x1x7x48x16xbf16, #tpu.memory_space<vmem>>, vector<1x1x5x48x16xbf16>
    %30 = vector.shape_cast %29 : vector<1x1x5x48x16xbf16> to vector<1x5x48x16xbf16>
    %31 = vector.shape_cast %30 : vector<1x5x48x16xbf16> to vector<1x240x16xbf16>
    %32 = vector.extract_strided_slice %31 {offsets = [0, 0, 0], sizes = [1, 192, 16], strides = [1, 1, 1]} : vector<1x240x16xbf16> to vector<1x192x16xbf16>
    %33 = vector.shape_cast %32 : vector<1x192x16xbf16> to vector<192x16xbf16>
    %34 = vector.extract_strided_slice %31 {offsets = [0, 1, 0], sizes = [1, 192, 16], strides = [1, 1, 1]} : vector<1x240x16xbf16> to vector<1x192x16xbf16>
    %35 = vector.shape_cast %34 : vector<1x192x16xbf16> to vector<192x16xbf16>
    %36 = vector.extract_strided_slice %31 {offsets = [0, 2, 0], sizes = [1, 192, 16], strides = [1, 1, 1]} : vector<1x240x16xbf16> to vector<1x192x16xbf16>
    %37 = vector.shape_cast %36 : vector<1x192x16xbf16> to vector<192x16xbf16>
    %c3 = arith.constant 3 : index
    %c0_25 = arith.constant 0 : index
    %c0_26 = arith.constant 0 : index
    %38 = vector.load %arg4[%c3, %c0_25, %c0_26] : memref<9x16x64xbf16, #tpu.memory_space<vmem>>, vector<1x16x64xbf16>
    %39 = vector.shape_cast %38 : vector<1x16x64xbf16> to vector<16x64xbf16>
    %cst_27 = arith.constant dense<0.000000e+00> : vector<192x64xf32>
    %40 = tpu.matmul %33, %39, %cst_27 {dimension_numbers = #tpu.dot_dimension_numbers<[1], [0], [0], [1], [0, 0, 1, 1], [], []>} : vector<192x16xbf16>, vector<16x64xbf16>, vector<192x64xf32> -> vector<192x64xf32>
    %c4 = arith.constant 4 : index
    %c0_28 = arith.constant 0 : index
    %c0_29 = arith.constant 0 : index
    %41 = vector.load %arg4[%c4, %c0_28, %c0_29] : memref<9x16x64xbf16, #tpu.memory_space<vmem>>, vector<1x16x64xbf16>
    %42 = vector.shape_cast %41 : vector<1x16x64xbf16> to vector<16x64xbf16>
    %cst_30 = arith.constant dense<0.000000e+00> : vector<192x64xf32>
    %43 = tpu.matmul %35, %42, %cst_30 {dimension_numbers = #tpu.dot_dimension_numbers<[1], [0], [0], [1], [0, 0, 1, 1], [], []>} : vector<192x16xbf16>, vector<16x64xbf16>, vector<192x64xf32> -> vector<192x64xf32>
    %44 = arith.addf %40, %43 : vector<192x64xf32>
    %c5 = arith.constant 5 : index
    %c0_31 = arith.constant 0 : index
    %c0_32 = arith.constant 0 : index
    %45 = vector.load %arg4[%c5, %c0_31, %c0_32] : memref<9x16x64xbf16, #tpu.memory_space<vmem>>, vector<1x16x64xbf16>
    %46 = vector.shape_cast %45 : vector<1x16x64xbf16> to vector<16x64xbf16>
    %cst_33 = arith.constant dense<0.000000e+00> : vector<192x64xf32>
    %47 = tpu.matmul %37, %46, %cst_33 {dimension_numbers = #tpu.dot_dimension_numbers<[1], [0], [0], [1], [0, 0, 1, 1], [], []>} : vector<192x16xbf16>, vector<16x64xbf16>, vector<192x64xf32> -> vector<192x64xf32>
    %48 = arith.addf %44, %47 : vector<192x64xf32>
    %c0_34 = arith.constant 0 : index
    %c0_35 = arith.constant 0 : index
    %c0_36 = arith.constant 0 : index
    %49 = vector.load %arg8[%c0_34, %c0_35, %c0_36] : memref<1x192x64xf32, #tpu.memory_space<vmem>>, vector<1x192x64xf32>
    %50 = vector.shape_cast %49 : vector<1x192x64xf32> to vector<192x64xf32>
    %51 = arith.addf %50, %48 : vector<192x64xf32>
    %c0_37 = arith.constant 0 : index
    %c0_38 = arith.constant 0 : index
    %c0_39 = arith.constant 0 : index
    %52 = vector.load %arg8[%c0_37, %c0_38, %c0_39] : memref<1x192x64xf32, #tpu.memory_space<vmem>>, vector<1x192x64xf32>
    %53 = vector.shape_cast %52 : vector<1x192x64xf32> to vector<192x64xf32>
    %54 = vector.shape_cast %51 : vector<192x64xf32> to vector<1x192x64xf32>
    tpu.vector_store %arg8[%c0_37, %c0_38, %c0_39], %54 {strides = array<i32>} : memref<1x192x64xf32, #tpu.memory_space<vmem>>, vector<1x192x64xf32>,
    %c0_40 = arith.constant 0 : index
    %c0_41 = arith.constant 0 : index
    %c2_42 = arith.constant 2 : index
    %c0_43 = arith.constant 0 : index
    %c0_44 = arith.constant 0 : index
    %55 = vector.load %arg3[%c0_40, %c0_41, %c2_42, %c0_43, %c0_44] : memref<1x1x7x48x16xbf16, #tpu.memory_space<vmem>>, vector<1x1x5x48x16xbf16>
    %56 = vector.shape_cast %55 : vector<1x1x5x48x16xbf16> to vector<1x5x48x16xbf16>
    %57 = vector.shape_cast %56 : vector<1x5x48x16xbf16> to vector<1x240x16xbf16>
    %58 = vector.extract_strided_slice %57 {offsets = [0, 0, 0], sizes = [1, 192, 16], strides = [1, 1, 1]} : vector<1x240x16xbf16> to vector<1x192x16xbf16>
    %59 = vector.shape_cast %58 : vector<1x192x16xbf16> to vector<192x16xbf16>
    %60 = vector.extract_strided_slice %57 {offsets = [0, 1, 0], sizes = [1, 192, 16], strides = [1, 1, 1]} : vector<1x240x16xbf16> to vector<1x192x16xbf16>
    %61 = vector.shape_cast %60 : vector<1x192x16xbf16> to vector<192x16xbf16>
    %62 = vector.extract_strided_slice %57 {offsets = [0, 2, 0], sizes = [1, 192, 16], strides = [1, 1, 1]} : vector<1x240x16xbf16> to vector<1x192x16xbf16>
    %63 = vector.shape_cast %62 : vector<1x192x16xbf16> to vector<192x16xbf16>
    %c6 = arith.constant 6 : index
    %c0_45 = arith.constant 0 : index
    %c0_46 = arith.constant 0 : index
    %64 = vector.load %arg4[%c6, %c0_45, %c0_46] : memref<9x16x64xbf16, #tpu.memory_space<vmem>>, vector<1x16x64xbf16>
    %65 = vector.shape_cast %64 : vector<1x16x64xbf16> to vector<16x64xbf16>
    %cst_47 = arith.constant dense<0.000000e+00> : vector<192x64xf32>
    %66 = tpu.matmul %59, %65, %cst_47 {dimension_numbers = #tpu.dot_dimension_numbers<[1], [0], [0], [1], [0, 0, 1, 1], [], []>} : vector<192x16xbf16>, vector<16x64xbf16>, vector<192x64xf32> -> vector<192x64xf32>
    %c7 = arith.constant 7 : index
    %c0_48 = arith.constant 0 : index
    %c0_49 = arith.constant 0 : index
    %67 = vector.load %arg4[%c7, %c0_48, %c0_49] : memref<9x16x64xbf16, #tpu.memory_space<vmem>>, vector<1x16x64xbf16>
    %68 = vector.shape_cast %67 : vector<1x16x64xbf16> to vector<16x64xbf16>
    %cst_50 = arith.constant dense<0.000000e+00> : vector<192x64xf32>
    %69 = tpu.matmul %61, %68, %cst_50 {dimension_numbers = #tpu.dot_dimension_numbers<[1], [0], [0], [1], [0, 0, 1, 1], [], []>} : vector<192x16xbf16>, vector<16x64xbf16>, vector<192x64xf32> -> vector<192x64xf32>
    %70 = arith.addf %66, %69 : vector<192x64xf32>
    %c8 = arith.constant 8 : index
    %c0_51 = arith.constant 0 : index
    %c0_52 = arith.constant 0 : index
    %71 = vector.load %arg4[%c8, %c0_51, %c0_52] : memref<9x16x64xbf16, #tpu.memory_space<vmem>>, vector<1x16x64xbf16>
    %72 = vector.shape_cast %71 : vector<1x16x64xbf16> to vector<16x64xbf16>
    %cst_53 = arith.constant dense<0.000000e+00> : vector<192x64xf32>
    %73 = tpu.matmul %63, %72, %cst_53 {dimension_numbers = #tpu.dot_dimension_numbers<[1], [0], [0], [1], [0, 0, 1, 1], [], []>} : vector<192x16xbf16>, vector<16x64xbf16>, vector<192x64xf32> -> vector<192x64xf32>
    %74 = arith.addf %70, %73 : vector<192x64xf32>
    %c0_54 = arith.constant 0 : index
    %c0_55 = arith.constant 0 : index
    %c0_56 = arith.constant 0 : index
    %75 = vector.load %arg8[%c0_54, %c0_55, %c0_56] : memref<1x192x64xf32, #tpu.memory_space<vmem>>, vector<1x192x64xf32>
    %76 = vector.shape_cast %75 : vector<1x192x64xf32> to vector<192x64xf32>
    %77 = arith.addf %76, %74 : vector<192x64xf32>
    %c0_57 = arith.constant 0 : index
    %c0_58 = arith.constant 0 : index
    %c0_59 = arith.constant 0 : index
    %78 = vector.load %arg8[%c0_57, %c0_58, %c0_59] : memref<1x192x64xf32, #tpu.memory_space<vmem>>, vector<1x192x64xf32>
    %79 = vector.shape_cast %78 : vector<1x192x64xf32> to vector<192x64xf32>
    %80 = vector.shape_cast %77 : vector<192x64xf32> to vector<1x192x64xf32>
    tpu.vector_store %arg8[%c0_57, %c0_58, %c0_59], %80 {strides = array<i32>} : memref<1x192x64xf32, #tpu.memory_space<vmem>>, vector<1x192x64xf32>,
    %c0_i32_60 = arith.constant 0 : i32
    %81 = arith.cmpi eq, %arg2, %c0_i32_60 : i32
    %82 = arith.extui %81 : i1 to i32
    %c0_i32_61 = arith.constant 0 : i32
    %83 = arith.cmpi ne, %82, %c0_i32_61 : i32
    scf.if %83 {
      %c0_62 = arith.constant 0 : index
      %c0_63 = arith.constant 0 : index
      %84 = vector.load %arg5[%c0_62, %c0_63] : memref<1x64xf32, #tpu.memory_space<vmem>>, vector<1x64xf32>
      %c0_64 = arith.constant 0 : index
      %c0_65 = arith.constant 0 : index
      %85 = vector.load %arg6[%c0_64, %c0_65] : memref<1x64xf32, #tpu.memory_space<vmem>>, vector<1x64xf32>
      %c0_66 = arith.constant 0 : index
      %c0_67 = arith.constant 0 : index
      %c0_68 = arith.constant 0 : index
      %86 = vector.load %arg8[%c0_66, %c0_67, %c0_68] : memref<1x192x64xf32, #tpu.memory_space<vmem>>, vector<1x192x64xf32>
      %87 = vector.shape_cast %86 : vector<1x192x64xf32> to vector<192x64xf32>
      %88 = vector.broadcast %84 : vector<1x64xf32> to vector<192x64xf32>
      %89 = arith.mulf %87, %88 : vector<192x64xf32>
      %90 = vector.broadcast %85 : vector<1x64xf32> to vector<192x64xf32>
      %91 = arith.addf %89, %90 : vector<192x64xf32>
      %cst_69 = arith.constant 0.000000e+00 : f32
      %92 = vector.broadcast %cst_69 : f32 to vector<192x64xf32>
      %93 = arith.maximumf %91, %92 : vector<192x64xf32>
      %94 = vector.shape_cast %93 : vector<192x64xf32> to vector<1x4x48x64xf32>
      %95 = vector.extract_strided_slice %94 {offsets = [0, 0, 0, 0], sizes = [1, 4, 32, 64], strides = [1, 1, 1, 1]} : vector<1x4x48x64xf32> to vector<1x4x32x64xf32>
      %96 = arith.truncf %95 : vector<1x4x32x64xf32> to vector<1x4x32x64xbf16>
      %c0_70 = arith.constant 0 : index
      %c0_71 = arith.constant 0 : index
      %c0_72 = arith.constant 0 : index
      %c0_73 = arith.constant 0 : index
      %97 = vector.load %arg7[%c0_70, %c0_71, %c0_72, %c0_73] : memref<1x4x32x64xbf16, #tpu.memory_space<vmem>>, vector<1x4x32x64xbf16>
      tpu.vector_store %arg7[%c0_70, %c0_71, %c0_72, %c0_73], %96 {strides = array<i32>} : memref<1x4x32x64xbf16, #tpu.memory_space<vmem>>, vector<1x4x32x64xbf16>,
    } else {
    }
    return
  }
  func.func @transform_0(%arg0: i32, %arg1: i32, %arg2: i32) -> (i32, i32, i32, i32, i32) {
    %c0_i32 = arith.constant 0 : i32
    %c0_i32_0 = arith.constant 0 : i32
    %c0_i32_1 = arith.constant 0 : i32
    %c0_i32_2 = arith.constant 0 : i32
    return %arg0, %c0_i32, %c0_i32_0, %c0_i32_1, %arg2 : i32, i32, i32, i32, i32
  }
  func.func @transform_1(%arg0: i32, %arg1: i32, %arg2: i32) -> (i32, i32, i32) {
    %c0_i32 = arith.constant 0 : i32
    %c0_i32_0 = arith.constant 0 : i32
    return %c0_i32, %arg2, %arg1 : i32, i32, i32
  }
  func.func @transform_2(%arg0: i32, %arg1: i32, %arg2: i32) -> (i32, i32) {
    %c0_i32 = arith.constant 0 : i32
    %c0_i32_0 = arith.constant 0 : i32
    return %c0_i32, %arg1 : i32, i32
  }
  func.func @transform_3(%arg0: i32, %arg1: i32, %arg2: i32) -> (i32, i32) {
    %c0_i32 = arith.constant 0 : i32
    %c0_i32_0 = arith.constant 0 : i32
    return %c0_i32, %arg1 : i32, i32
  }
  func.func @transform_4(%arg0: i32, %arg1: i32, %arg2: i32) -> (i32, i32, i32, i32) {
    %c0_i32 = arith.constant 0 : i32
    %c0_i32_0 = arith.constant 0 : i32
    %c0_i32_1 = arith.constant 0 : i32
    return %arg0, %c0_i32, %c0_i32_0, %arg1 : i32, i32, i32, i32
  }
}

</mosaic_0001>

<llo_original>
// kernel: tpu_custom_call.1
$region0: #{tpu_custom_call.1}
  #allocation0 [shape = 'u32[]', space=smem, size = 0x4, offset = 0x4, fixed_abs, tag = 'smem constant byte address 0x4 - core index']
  #allocation1 [shape = 'u32[72,128]{1,0:T(1,128)}', space=vmem, size = 0x9000, scoped, tag = 'internal scratch']
  #allocation2 [shape = 'f32[1,192,64]{2,1,0:T(8,128)}', space=vmem, size = 0x18000, scoped, tag = 'scratch operand']
  %s0 = inlined_call_operand.vmem [shape: bf16[2,1,7,48,16], index: 0, kind: input, shape index: {}]
  %s1 = inlined_call_operand.vmem [shape: bf16[9,16,64], index: 1, kind: input, shape index: {}]
  %s2 = inlined_call_operand.vmem [shape: f32[1,64], index: 2, kind: input, shape index: {}]
  %s3 = inlined_call_operand.vmem [shape: f32[1,64], index: 3, kind: input, shape index: {}]
  %s4 = inlined_call_operand.hbm [shape: bf16[2,4,32,64], index: 4, kind: output, shape index: {}]
  %s5 = sld [smem:[#allocation0]]
  $region57: #{tpu_custom_call.1} parent=0
    _
  %s7 = ssub.s32 1, %s5
  %s8 = scalar_select 0, %s7, %s5
  $region1: #{tpu_custom_call.1} parent=0
    #allocation3 [shape = 'u8[65536]{0}', space=vmem, size = 0x10000, scoped, tag = 'output window, operand 0']
    #allocation4 [shape = 's32[2]{0}', space=sflag, size = 0x8, scoped, tag = 'scoped memory for tpu_custom_call.1']
    %9 = vsyncpa [#allocation4], 0
    %s10 = scalar_lea.sflag [#allocation4], 1
    %11 = vsyncpa %s10, 0
    loop: start=0, step=1, limit=4
    $region2: #{tpu_custom_call.1} parent=1 // loop_pre_header
      _
    $region3: #{tpu_custom_call.1} parent=1 // loop_header
      %s13 = sphi 0, %s17
      %p14 = scmp.ge.s32.totalorder %s13, 4
      %s20 = sphi 0, %s39
      %s21 = sphi 0, %s35
      %s22 = sphi 0, %s31
      %s23 = sphi 0, %s20
      %s24 = sphi 0, %s21
      %s25 = sphi 0, %s22
      %s26 = sphi 0, %s23
      %s27 = sphi 0, %s24
      %s28 = sphi 0, %s25
      %s44 = sphi 0, %s46
      %s47 = sphi 0, %s44
      %s48 = sphi 0, %s47
      %s64 = sphi 0, %s48
      %s72 = sphi 0, %s74
      %s75 = sphi 0, %s72
      %s76 = sphi 0, %s75
      %s92 = sphi 0, %s76
      %s98 = sphi 0, %s100
      %s101 = sphi 0, %s98
      %s102 = sphi 0, %s101
      %s118 = sphi 0, %s102
      %s124 = sphi 0, %s126
      %s127 = sphi 0, %s124
      %s128 = sphi 0, %s127
      %s144 = sphi 0, %s128
      %s152 = sphi 0, %s154
      %s155 = sphi 0, %s152
      %s156 = sphi 0, %s155
      %s172 = sphi 0, %s156
    $region4: #{tpu_custom_call.1} parent=1 // loop_header_branch
      %16 = sbr.rel (%p14) target = $region8
    $region5: #{tpu_custom_call.1} parent=1 // loop_body
      %s18 = ssub.s32 %s13, 1
      %s19 = ssub.s32 %s13, 2
      %s29 = sadd.s32 1, %s22
      %p30 = scmp.ge.s32.totalorder %s29, 1
      %s31 = scalar_select %p30, 0, %s29
      %s32 = sadd.s32 1, %s21
      %s33 = scalar_select %p30, %s32, %s21
      %p34 = scmp.ge.s32.totalorder %s33, 1
      %s35 = scalar_select %p34, 0, %s33
      %s36 = sadd.s32 1, %s20
      %s37 = scalar_select %p34, %s36, %s20
      %p38 = scmp.ge.s32.totalorder %s37, 2
      %s39 = scalar_select %p38, 0, %s37
      %s40 = ssub.s32 %s20, %s39
      %s41 = ssub.s32 %s22, %s31
      %s42 = sor.u32 %s40, %s41
      %p43 = scmp.eq.s32.totalorder %s42, 0
      %s45 = sadd.s32 %s44, 1
      %s46 = scalar_select %p43, %s44, %s45
      %p49 = pneg %p43
      %p50 = scmp.eq.s32.totalorder %s13, 1
      %p51 = por %p49, %p50
      %p52 = scmp.ne.s32.totalorder %s44, %s47
      %p53 = scmp.eq.s32.totalorder %s13, 0
      %p54 = por %p52, %p53
      %p55 = scmp.ne.s32.totalorder %s44, %s47
      %p56 = scmp.eq.s32.totalorder %s18, 1
      %p57 = por %p55, %p56
      %p58 = scmp.ne.s32.totalorder %s47, %s48
      %p59 = scmp.eq.s32.totalorder %s18, 0
      %p60 = por %p58, %p59
      %p61 = scmp.ne.s32.totalorder %s47, %s48
      %p62 = scmp.eq.s32.totalorder %s19, 1
      %p63 = por %p61, %p62
      %p65 = scmp.ne.s32.totalorder %s48, %s64
      %p66 = scmp.eq.s32.totalorder %s19, 0
      %p67 = por %p65, %p66
      %s68 = ssub.s32 %s22, %s31
      %s69 = ssub.s32 %s21, %s35
      %s70 = sor.u32 %s68, %s69
      %p71 = scmp.eq.s32.totalorder %s70, 0
      %s73 = sadd.s32 %s72, 1
      %s74 = scalar_select %p71, %s72, %s73
      %p77 = pneg %p71
      %p78 = scmp.eq.s32.totalorder %s13, 1
      %p79 = por %p77, %p78
      %p80 = scmp.ne.s32.totalorder %s72, %s75
      %p81 = scmp.eq.s32.totalorder %s13, 0
      %p82 = por %p80, %p81
      %p83 = scmp.ne.s32.totalorder %s72, %s75
      %p84 = scmp.eq.s32.totalorder %s18, 1
      %p85 = por %p83, %p84
      %p86 = scmp.ne.s32.totalorder %s75, %s76
      %p87 = scmp.eq.s32.totalorder %s18, 0
      %p88 = por %p86, %p87
      %p89 = scmp.ne.s32.totalorder %s75, %s76
      %p90 = scmp.eq.s32.totalorder %s19, 1
      %p91 = por %p89, %p90
      %p93 = scmp.ne.s32.totalorder %s76, %s92
      %p94 = scmp.eq.s32.totalorder %s19, 0
      %p95 = por %p93, %p94
      %s96 = ssub.s32 %s21, %s35
      %p97 = scmp.eq.s32.totalorder %s96, 0
      %s99 = sadd.s32 %s98, 1
      %s100 = scalar_select %p97, %s98, %s99
      %p103 = pneg %p97
      %p104 = scmp.eq.s32.totalorder %s13, 1
      %p105 = por %p103, %p104
      %p106 = scmp.ne.s32.totalorder %s98, %s101
      %p107 = scmp.eq.s32.totalorder %s13, 0
      %p108 = por %p106, %p107
      %p109 = scmp.ne.s32.totalorder %s98, %s101
      %p110 = scmp.eq.s32.totalorder %s18, 1
      %p111 = por %p109, %p110
      %p112 = scmp.ne.s32.totalorder %s101, %s102
      %p113 = scmp.eq.s32.totalorder %s18, 0
      %p114 = por %p112, %p113
      %p115 = scmp.ne.s32.totalorder %s101, %s102
      %p116 = scmp.eq.s32.totalorder %s19, 1
      %p117 = por %p115, %p116
      %p119 = scmp.ne.s32.totalorder %s102, %s118
      %p120 = scmp.eq.s32.totalorder %s19, 0
      %p121 = por %p119, %p120
      %s122 = ssub.s32 %s21, %s35
      %p123 = scmp.eq.s32.totalorder %s122, 0
      %s125 = sadd.s32 %s124, 1
      %s126 = scalar_select %p123, %s124, %s125
      %p129 = pneg %p123
      %p130 = scmp.eq.s32.totalorder %s13, 1
      %p131 = por %p129, %p130
      %p132 = scmp.ne.s32.totalorder %s124, %s127
      %p133 = scmp.eq.s32.totalorder %s13, 0
      %p134 = por %p132, %p133
      %p135 = scmp.ne.s32.totalorder %s124, %s127
      %p136 = scmp.eq.s32.totalorder %s18, 1
      %p137 = por %p135, %p136
      %p138 = scmp.ne.s32.totalorder %s127, %s128
      %p139 = scmp.eq.s32.totalorder %s18, 0
      %p140 = por %p138, %p139
      %p141 = scmp.ne.s32.totalorder %s127, %s128
      %p142 = scmp.eq.s32.totalorder %s19, 1
      %p143 = por %p141, %p142
      %p145 = scmp.ne.s32.totalorder %s128, %s144
      %p146 = scmp.eq.s32.totalorder %s19, 0
      %p147 = por %p145, %p146
      %s148 = ssub.s32 %s20, %s39
      %s149 = ssub.s32 %s21, %s35
      %s150 = sor.u32 %s148, %s149
      %p151 = scmp.eq.s32.totalorder %s150, 0
      %s153 = sadd.s32 %s152, 1
      %s154 = scalar_select %p151, %s152, %s153
      %p157 = pneg %p151
      %p158 = scmp.eq.s32.totalorder %s13, 1
      %p159 = por %p157, %p158
      %p160 = scmp.ne.s32.totalorder %s152, %s155
      %p161 = scmp.eq.s32.totalorder %s13, 0
      %p162 = por %p160, %p161
      %p163 = scmp.ne.s32.totalorder %s152, %s155
      %p164 = scmp.eq.s32.totalorder %s18, 1
      %p165 = por %p163, %p164
      %p166 = scmp.ne.s32.totalorder %s155, %s156
      %p167 = scmp.eq.s32.totalorder %s18, 0
      %p168 = por %p166, %p167
      %p169 = scmp.ne.s32.totalorder %s155, %s156
      %p170 = scmp.eq.s32.totalorder %s19, 1
      %p171 = por %p169, %p170
      %p173 = scmp.ne.s32.totalorder %s156, %s172
      %p174 = scmp.eq.s32.totalorder %s19, 0
      %p175 = por %p173, %p174
      %p176 = scmp.le.s32.totalorder 1, %s13
      %p177 = scmp.lt.s32.totalorder %s13, 3
      %p178 = pnand %p176, %p177
      %p179 = pneg %p178
      // Predicated region
      $region9: #{tpu_custom_call.1} parent=5 // pred_check
        _
      $region10: #{tpu_custom_call.1} parent=5 // pred_check_branch
        %181 = sbr.rel (%p178) target = $region12
      $region11: #{tpu_custom_call.1} parent=5 // pred_region
        %s182 = ssub.s32 %s13, 1
        // Predicated region
        $region13: #{tpu_custom_call.1} parent=11 // pred_check
          %p183 = pneg %p88
        $region14: #{tpu_custom_call.1} parent=11 // pred_check_branch
          %185 = sbr.rel (%p183) target = $region16
        $region15: #{tpu_custom_call.1} parent=11 // pred_region
          %s186 = smul.u32 2, %s25
          %p187 = scmp.lt.s32.totalorder %s186, 1
          %s188 = scalar_select %p187, %s186, 1
          %p189 = scmp.lt.s32.totalorder %s24, 0
          %s190 = scalar_select %p189, %s24, 0
          %s191 = sadd.s32 %s190, %s188
          %s192 = smul.addr %s191, 4
          %s193 = scalar_lea.vmem %s1, %s192
          %s194 = smul.u32 2, %s25
        $region16: #{tpu_custom_call.1} parent=11 // pred_fallthru
          _
        // Predicated region
        $region17: #{tpu_custom_call.1} parent=11 // pred_check
          %p195 = pneg %p114
        $region18: #{tpu_custom_call.1} parent=11 // pred_check_branch
          %197 = sbr.rel (%p195) target = $region20
        $region19: #{tpu_custom_call.1} parent=11 // pred_region
          %p198 = scmp.lt.s32.totalorder %s24, 0
          %s199 = scalar_select %p198, %s24, 0
          %s200 = scalar_lea.vmem %s2, %s199
        $region20: #{tpu_custom_call.1} parent=11 // pred_fallthru
          _
        // Predicated region
        $region21: #{tpu_custom_call.1} parent=11 // pred_check
          %p201 = pneg %p140
        $region22: #{tpu_custom_call.1} parent=11 // pred_check_branch
          %203 = sbr.rel (%p201) target = $region24
        $region23: #{tpu_custom_call.1} parent=11 // pred_region
          %p204 = scmp.lt.s32.totalorder %s24, 0
          %s205 = scalar_select %p204, %s24, 0
          %s206 = scalar_lea.vmem %s3, %s205
        $region24: #{tpu_custom_call.1} parent=11 // pred_fallthru
          _
      $region12: #{tpu_custom_call.1} parent=5 // pred_fallthru
        _
      %p207 = scmp.lt.s32.totalorder %s13, 2
      // Predicated region
      $region25: #{tpu_custom_call.1} parent=5 // pred_check
        %p208 = pneg %p207
      $region26: #{tpu_custom_call.1} parent=5 // pred_check_branch
        %210 = sbr.rel (%p208) target = $region28
      $region27: #{tpu_custom_call.1} parent=5 // pred_region
        // Predicated region
        $region29: #{tpu_custom_call.1} parent=27 // pred_check
          %p211 = pneg %p54
        $region30: #{tpu_custom_call.1} parent=27 // pred_check_branch
          %213 = sbr.rel (%p211) target = $region32
        $region31: #{tpu_custom_call.1} parent=27 // pred_region
          %p214 = scmp.lt.s32.totalorder %s20, 1
          %s215 = scalar_select %p214, %s20, 1
          %p216 = scmp.lt.s32.totalorder %s22, 0
          %s217 = scalar_select %p216, %s22, 0
          %s218 = smul.addr %s215, 42
          %s219 = sadd.s32 %s217, %s218
          %s220 = smul.addr %s219, 4
          %s221 = scalar_lea.vmem %s0, %s220
        $region32: #{tpu_custom_call.1} parent=27 // pred_fallthru
          _
      $region28: #{tpu_custom_call.1} parent=5 // pred_fallthru
        _
      %p222 = scmp.le.s32.totalorder 1, %s13
      %p223 = scmp.lt.s32.totalorder %s13, 3
      %p224 = pnand %p222, %p223
      %p225 = pneg %p224
      // Predicated region
      $region33: #{tpu_custom_call.1} parent=5 // pred_check
        _
      $region34: #{tpu_custom_call.1} parent=5 // pred_check_branch
        %227 = sbr.rel (%p224) target = $region36
      $region35: #{tpu_custom_call.1} parent=5 // pred_region
        %s228 = ssub.s32 %s13, 1
        %p229 = scmp.lt.s32.totalorder %s23, 1
        %s230 = scalar_select %p229, %s23, 1
        %p231 = scmp.lt.s32.totalorder %s25, 0
        %s232 = scalar_select %p231, %s25, 0
        %s233 = smul.addr %s230, 42
        %s234 = sadd.s32 %s232, %s233
        %s235 = smul.addr %s234, 4
        %s236 = scalar_lea.vmem %s0, %s235
        %p237 = pneg %p60
        %p238 = pneg %p57
        %s239 = smul.u32 2, %s25
        %p240 = scmp.lt.s32.totalorder %s239, 1
        %s241 = scalar_select %p240, %s239, 1
        %p242 = scmp.lt.s32.totalorder %s24, 0
        %s243 = scalar_select %p242, %s24, 0
        %s244 = sadd.s32 %s243, %s241
        %s245 = smul.addr %s244, 4
        %s246 = scalar_lea.vmem %s1, %s245
        %p247 = pneg %p88
        %p248 = pneg %p85
        %p249 = scmp.lt.s32.totalorder %s24, 0
        %s250 = scalar_select %p249, %s24, 0
        %s251 = scalar_lea.vmem %s2, %s250
        %p252 = pneg %p114
        %p253 = pneg %p111
        %p254 = scmp.lt.s32.totalorder %s24, 0
        %s255 = scalar_select %p254, %s24, 0
        %s256 = scalar_lea.vmem %s3, %s255
        %p257 = pneg %p140
        %p258 = pneg %p137
        %p259 = pneg %p168
        %p260 = pneg %p165
        %s261 = sand.u32 %s155, 1
        %s262 = scalar_lea.sflag [#allocation4], %s261
        %s263 = sand.u32 %s155, 1
        %s264 = smul.addr %s263, 64
        %s265 = scalar_lea.vmem [#allocation3], %s264
        %p266 = scmp.lt.s32.totalorder %s23, 1
        %s267 = scalar_select %p266, %s23, 1
        %p268 = scmp.lt.s32.totalorder %s25, 0
        %s269 = scalar_select %p268, %s25, 0
        %s270 = smul.addr %s267, 42
        %s271 = sadd.s32 %s269, %s270
        %s272 = smul.addr %s271, 4
        %s273 = scalar_lea.vmem %s0, %s272
        %s274 = smul.u32 2, %s25
        %p275 = scmp.lt.s32.totalorder %s274, 1
        %s276 = scalar_select %p275, %s274, 1
        %p277 = scmp.lt.s32.totalorder %s24, 0
        %s278 = scalar_select %p277, %s24, 0
        %s279 = sadd.s32 %s278, %s276
        %s280 = smul.addr %s279, 4
        %s281 = scalar_lea.vmem %s1, %s280
        %s282 = smul.u32 2, %s25
        %p283 = scmp.lt.s32.totalorder %s24, 0
        %s284 = scalar_select %p283, %s24, 0
        %s285 = scalar_lea.vmem %s2, %s284
        %p286 = scmp.lt.s32.totalorder %s24, 0
        %s287 = scalar_select %p286, %s24, 0
        %s288 = scalar_lea.vmem %s3, %s287
        %p290 = scmp.eq.s32.totalorder %s25, 0
        // Predicated region
        $region37: #{tpu_custom_call.1} parent=35 // pred_check
          %p291 = pneg %p290
        $region38: #{tpu_custom_call.1} parent=35 // pred_check_branch
          %293 = sbr.rel (%p291) target = $region40
        $region39: #{tpu_custom_call.1} parent=35 // pred_region
          %vm294 = vcmask 523264
          %295 = vst.msk [vmem:[#allocation2] sm:$0xff] %vm294, 0.0
          %296 = vst.msk [vmem:[#allocation2 + $0x8] sm:$0xff] %vm294, 0.0
          %297 = vst.msk [vmem:[#allocation2 + $0x10] sm:$0xff] %vm294, 0.0
          %298 = vst.msk [vmem:[#allocation2 + $0x18] sm:$0xff] %vm294, 0.0
          %299 = vst.msk [vmem:[#allocation2 + $0x20] sm:$0xff] %vm294, 0.0
          %300 = vst.msk [vmem:[#allocation2 + $0x28] sm:$0xff] %vm294, 0.0
          %301 = vst.msk [vmem:[#allocation2 + $0x30] sm:$0xff] %vm294, 0.0
          %302 = vst.msk [vmem:[#allocation2 + $0x38] sm:$0xff] %vm294, 0.0
          %303 = vst.msk [vmem:[#allocation2 + $0x40] sm:$0xff] %vm294, 0.0
          %304 = vst.msk [vmem:[#allocation2 + $0x48] sm:$0xff] %vm294, 0.0
          %305 = vst.msk [vmem:[#allocation2 + $0x50] sm:$0xff] %vm294, 0.0
          %306 = vst.msk [vmem:[#allocation2 + $0x58] sm:$0xff] %vm294, 0.0
          %307 = vst.msk [vmem:[#allocation2 + $0x60] sm:$0xff] %vm294, 0.0
          %308 = vst.msk [vmem:[#allocation2 + $0x68] sm:$0xff] %vm294, 0.0
          %309 = vst.msk [vmem:[#allocation2 + $0x70] sm:$0xff] %vm294, 0.0
          %310 = vst.msk [vmem:[#allocation2 + $0x78] sm:$0xff] %vm294, 0.0
          %311 = vst.msk [vmem:[#allocation2 + $0x80] sm:$0xff] %vm294, 0.0
          %312 = vst.msk [vmem:[#allocation2 + $0x88] sm:$0xff] %vm294, 0.0
          %313 = vst.msk [vmem:[#allocation2 + $0x90] sm:$0xff] %vm294, 0.0
          %314 = vst.msk [vmem:[#allocation2 + $0x98] sm:$0xff] %vm294, 0.0
          %315 = vst.msk [vmem:[#allocation2 + $0xa0] sm:$0xff] %vm294, 0.0
          %316 = vst.msk [vmem:[#allocation2 + $0xa8] sm:$0xff] %vm294, 0.0
          %317 = vst.msk [vmem:[#allocation2 + $0xb0] sm:$0xff] %vm294, 0.0
          %318 = vst.msk [vmem:[#allocation2 + $0xb8] sm:$0xff] %vm294, 0.0
        $region40: #{tpu_custom_call.1} parent=35 // pred_fallthru
          _
        %v319 = vld [vmem:[%s273] sm:$0xf]
        %v320 = vld [vmem:[%s273 + $0x4] sm:$0xf]
        %v321 = vld [vmem:[%s273 + $0x8] sm:$0xf]
        %v322 = vld [vmem:[%s273 + $0xc] sm:$0xf]
        %v323 = vld [vmem:[%s273 + $0x10] sm:$0xf]
        %v324 = vld [vmem:[%s273 + $0x14] sm:$0xf]
        %v325 = vld [vmem:[%s273 + $0x18] sm:$0xf]
        %v326 = vld [vmem:[%s273 + $0x1c] sm:$0xf]
        %v327 = vld [vmem:[%s273 + $0x20] sm:$0xf]
        %v328 = vld [vmem:[%s273 + $0x24] sm:$0xf]
        %v329 = vld [vmem:[%s273 + $0x28] sm:$0xf]
        %v330 = vld [vmem:[%s273 + $0x2c] sm:$0xf]
        %v331 = vld [vmem:[%s273 + $0x30] sm:$0xf]
        %v332 = vld [vmem:[%s273 + $0x34] sm:$0xf]
        %v333 = vld [vmem:[%s273 + $0x38] sm:$0xf]
        %v334 = vld [vmem:[%s273 + $0x3c] sm:$0xf]
        %v335 = vld [vmem:[%s273 + $0x40] sm:$0xf]
        %v336 = vld [vmem:[%s273 + $0x44] sm:$0xf]
        %v337 = vld [vmem:[%s273 + $0x48] sm:$0xf]
        %v338 = vld [vmem:[%s273 + $0x4c] sm:$0xf]
        %v339 = vld [vmem:[%s273 + $0x50] sm:$0xf]
        %v340 = vld [vmem:[%s273 + $0x54] sm:$0xf]
        %v341 = vld [vmem:[%s273 + $0x58] sm:$0xf]
        %v342 = vld [vmem:[%s273 + $0x5c] sm:$0xf]
        %v343 = vld [vmem:[%s273 + $0x60] sm:$0xf]
        %v344 = vld [vmem:[%s281] sm:$0xf]
        %v345 = vld [vmem:[%s281 + $0x4] sm:$0xf]
        %s346 = scalar_lea.vmem %s281, 8
        %v347 = vld [vmem:[%s346] sm:$0xf]
        %v348 = vld [vmem:[%s346 + $0x4] sm:$0xf]
        %v374 = vunpack.c.l.b16 %v319
        %v375 = vunpack.c.l.b16 %v320
        %v376 = vunpack.c.l.b16 %v321
        %v377 = vunpack.c.l.b16 %v322
        %v378 = vunpack.c.l.b16 %v323
        %v379 = vunpack.c.l.b16 %v324
        %v380 = vunpack.c.l.b16 %v325
        %v381 = vunpack.c.l.b16 %v326
        %v382 = vunpack.c.l.b16 %v327
        %v383 = vunpack.c.l.b16 %v328
        %v384 = vunpack.c.l.b16 %v329
        %v385 = vunpack.c.l.b16 %v330
        %v386 = vunpack.c.l.b16 %v331
        %v387 = vunpack.c.l.b16 %v332
        %v388 = vunpack.c.l.b16 %v333
        %v389 = vunpack.c.l.b16 %v334
        %v390 = vunpack.c.l.b16 %v335
        %v391 = vunpack.c.l.b16 %v336
        %v392 = vunpack.c.l.b16 %v337
        %v393 = vunpack.c.l.b16 %v338
        %v394 = vunpack.c.l.b16 %v339
        %v395 = vunpack.c.l.b16 %v340
        %v396 = vunpack.c.l.b16 %v341
        %v397 = vunpack.c.l.b16 %v342
        %v398 = vunpack.c.l.b16 %v343
        %v399 = vpack.c.b16 %v375, %v374
        %v400 = vpack.c.b16 %v377, %v376
        %v401 = vpack.c.b16 %v379, %v378
        %v402 = vpack.c.b16 %v381, %v380
        %v403 = vpack.c.b16 %v383, %v382
        %v404 = vpack.c.b16 %v385, %v384
        %v405 = vpack.c.b16 %v387, %v386
        %v406 = vpack.c.b16 %v389, %v388
        %v407 = vpack.c.b16 %v391, %v390
        %v408 = vpack.c.b16 %v393, %v392
        %v409 = vpack.c.b16 %v395, %v394
        %v410 = vpack.c.b16 %v397, %v396
        %v411 = vpack.c.b16 %v398, %v398
        %vm412 = vsmask.f32 7424
        %v414 = vshrl.u32 %v399, 16
        %v416 = vshll.u32 %v399, 16
        %v418 = vrot.slane %v416, 1
        %v419 = vor.u32 %v414, %v418
        %v421 = vshll.u32 %v400, 16
        %v423 = vrot.slane %v421, 1
        %v424 = vsel %vm412, %v419, %v423
        %v425 = vshrl.u32 %v400, 16
        %v427 = vor.u32 %v425, %v423
        %v429 = vshll.u32 %v401, 16
        %v431 = vrot.slane %v429, 1
        %v432 = vsel %vm412, %v427, %v431
        %v433 = vshrl.u32 %v401, 16
        %v435 = vor.u32 %v433, %v431
        %v437 = vshll.u32 %v402, 16
        %v439 = vrot.slane %v437, 1
        %v440 = vsel %vm412, %v435, %v439
        %v441 = vshrl.u32 %v402, 16
        %v443 = vor.u32 %v441, %v439
        %v445 = vshll.u32 %v403, 16
        %v447 = vrot.slane %v445, 1
        %v448 = vsel %vm412, %v443, %v447
        %v449 = vshrl.u32 %v403, 16
        %v451 = vor.u32 %v449, %v447
        %v453 = vshll.u32 %v404, 16
        %v455 = vrot.slane %v453, 1
        %v456 = vsel %vm412, %v451, %v455
        %v457 = vshrl.u32 %v404, 16
        %v459 = vor.u32 %v457, %v455
        %v461 = vshll.u32 %v405, 16
        %v463 = vrot.slane %v461, 1
        %v464 = vsel %vm412, %v459, %v463
        %v465 = vshrl.u32 %v405, 16
        %v467 = vor.u32 %v465, %v463
        %v469 = vshll.u32 %v406, 16
        %v471 = vrot.slane %v469, 1
        %v472 = vsel %vm412, %v467, %v471
        %v473 = vshrl.u32 %v406, 16
        %v475 = vor.u32 %v473, %v471
        %v477 = vshll.u32 %v407, 16
        %v479 = vrot.slane %v477, 1
        %v480 = vsel %vm412, %v475, %v479
        %v481 = vshrl.u32 %v407, 16
        %v483 = vor.u32 %v481, %v479
        %v485 = vshll.u32 %v408, 16
        %v487 = vrot.slane %v485, 1
        %v488 = vsel %vm412, %v483, %v487
        %v489 = vshrl.u32 %v408, 16
        %v491 = vor.u32 %v489, %v487
        %v493 = vshll.u32 %v409, 16
        %v495 = vrot.slane %v493, 1
        %v496 = vsel %vm412, %v491, %v495
        %v497 = vshrl.u32 %v409, 16
        %v499 = vor.u32 %v497, %v495
        %v501 = vshll.u32 %v410, 16
        %v503 = vrot.slane %v501, 1
        %v504 = vsel %vm412, %v499, %v503
        %v505 = vshrl.u32 %v410, 16
        %v507 = vor.u32 %v505, %v503
        %v509 = vshll.u32 %v411, 16
        %v511 = vrot.slane %v509, 1
        %v512 = vsel %vm412, %v507, %v511
        %v515 = vunpack.c.l.b16 %v347
        %v516 = vunpack.c.l.b16 %v348
        %v517 = vpack.c.b16 %v516, %v515
        %vm519 = vcmask 130048
        %v521 = vsel %vm519, %v424, 0
        %v524 = vsel %vm519, %v432, 0
        %v527 = vsel %vm519, %v440, 0
        %v530 = vsel %vm519, %v448, 0
        %v533 = vsel %vm519, %v456, 0
        %v536 = vsel %vm519, %v464, 0
        %v539 = vsel %vm519, %v472, 0
        %v542 = vsel %vm519, %v480, 0
        %v545 = vsel %vm519, %v488, 0
        %v548 = vsel %vm519, %v496, 0
        %v551 = vsel %vm519, %v504, 0
        %v554 = vsel %vm519, %v512, 0
        %556 = vmatpush.bf16.msra.mxu0 0
        %557 = vmatpush.bf16.msra.mxu0 0
        %558 = vmatpush.bf16.msra.mxu0 0
        %559 = vmatpush.bf16.msra.mxu0 0
        %560 = vmatpush.bf16.msra.mxu0 0
        %561 = vmatpush.bf16.msra.mxu0 0
        %562 = vmatpush.bf16.msra.mxu0 0
        %563 = vmatpush.bf16.msra.mxu0 %v517
        %564 = vmatmul.bf16.gmra.mxu0 %v521
        %v565 = vpop.f32.mrf.mxu0
        %v566 = vadd.f32 0.0, %v565
        %v567 = vpop.f32.mrf.mxu0
        %v568 = vadd.f32 0.0, %v567
        %569 = vmatmul.bf16.gmra.mxu0 %v524
        %v570 = vpop.f32.mrf.mxu0
        %v571 = vadd.f32 0.0, %v570
        %v572 = vpop.f32.mrf.mxu0
        %v573 = vadd.f32 0.0, %v572
        %574 = vmatmul.bf16.gmra.mxu0 %v527
        %v575 = vpop.f32.mrf.mxu0
        %v576 = vadd.f32 0.0, %v575
        %v577 = vpop.f32.mrf.mxu0
        %v578 = vadd.f32 0.0, %v577
        %579 = vmatmul.bf16.gmra.mxu0 %v530
        %v580 = vpop.f32.mrf.mxu0
        %v581 = vadd.f32 0.0, %v580
        %v582 = vpop.f32.mrf.mxu0
        %v583 = vadd.f32 0.0, %v582
        %584 = vmatmul.bf16.gmra.mxu0 %v533
        %v585 = vpop.f32.mrf.mxu0
        %v586 = vadd.f32 0.0, %v585
        %v587 = vpop.f32.mrf.mxu0
        %v588 = vadd.f32 0.0, %v587
        %589 = vmatmul.bf16.gmra.mxu0 %v536
        %v590 = vpop.f32.mrf.mxu0
        %v591 = vadd.f32 0.0, %v590
        %v592 = vpop.f32.mrf.mxu0
        %v593 = vadd.f32 0.0, %v592
        %594 = vmatmul.bf16.gmra.mxu0 %v539
        %v595 = vpop.f32.mrf.mxu0
        %v596 = vadd.f32 0.0, %v595
        %v597 = vpop.f32.mrf.mxu0
        %v598 = vadd.f32 0.0, %v597
        %599 = vmatmul.bf16.gmra.mxu0 %v542
        %v600 = vpop.f32.mrf.mxu0
        %v601 = vadd.f32 0.0, %v600
        %v602 = vpop.f32.mrf.mxu0
        %v603 = vadd.f32 0.0, %v602
        %604 = vmatmul.bf16.gmra.mxu0 %v545
        %v605 = vpop.f32.mrf.mxu0
        %v606 = vadd.f32 0.0, %v605
        %v607 = vpop.f32.mrf.mxu0
        %v608 = vadd.f32 0.0, %v607
        %609 = vmatmul.bf16.gmra.mxu0 %v548
        %v610 = vpop.f32.mrf.mxu0
        %v611 = vadd.f32 0.0, %v610
        %v612 = vpop.f32.mrf.mxu0
        %v613 = vadd.f32 0.0, %v612
        %614 = vmatmul.bf16.gmra.mxu0 %v551
        %v615 = vpop.f32.mrf.mxu0
        %v616 = vadd.f32 0.0, %v615
        %v617 = vpop.f32.mrf.mxu0
        %v618 = vadd.f32 0.0, %v617
        %619 = vmatmul.bf16.gmra.mxu0 %v554
        %v620 = vpop.f32.mrf.mxu0
        %v621 = vadd.f32 0.0, %v620
        %v622 = vpop.f32.mrf.mxu0
        %v623 = vadd.f32 0.0, %v622
        %624 = vdwg.mxu0
        %v627 = vunpack.c.l.b16 %v344
        %v628 = vunpack.c.l.b16 %v345
        %v629 = vpack.c.b16 %v628, %v627
        %v631 = vsel %vm519, %v399, 0
        %v633 = vsel %vm519, %v400, 0
        %v635 = vsel %vm519, %v401, 0
        %v637 = vsel %vm519, %v402, 0
        %v639 = vsel %vm519, %v403, 0
        %v641 = vsel %vm519, %v404, 0
        %v643 = vsel %vm519, %v405, 0
        %v645 = vsel %vm519, %v406, 0
        %v647 = vsel %vm519, %v407, 0
        %v649 = vsel %vm519, %v408, 0
        %v651 = vsel %vm519, %v409, 0
        %v653 = vsel %vm519, %v410, 0
        %655 = vmatpush.bf16.msra.mxu0 0
        %656 = vmatpush.bf16.msra.mxu0 0
        %657 = vmatpush.bf16.msra.mxu0 0
        %658 = vmatpush.bf16.msra.mxu0 0
        %659 = vmatpush.bf16.msra.mxu0 0
        %660 = vmatpush.bf16.msra.mxu0 0
        %661 = vmatpush.bf16.msra.mxu0 0
        %662 = vmatpush.bf16.msra.mxu0 %v629
        %663 = vmatmul.bf16.gmra.mxu0 %v631
        %v664 = vpop.f32.mrf.mxu0
        %v665 = vadd.f32 %v566, %v664
        %v666 = vpop.f32.mrf.mxu0
        %v667 = vadd.f32 %v568, %v666
        %668 = vmatmul.bf16.gmra.mxu0 %v633
        %v669 = vpop.f32.mrf.mxu0
        %v670 = vadd.f32 %v571, %v669
        %v671 = vpop.f32.mrf.mxu0
        %v672 = vadd.f32 %v573, %v671
        %673 = vmatmul.bf16.gmra.mxu0 %v635
        %v674 = vpop.f32.mrf.mxu0
        %v675 = vadd.f32 %v576, %v674
        %v676 = vpop.f32.mrf.mxu0
        %v677 = vadd.f32 %v578, %v676
        %678 = vmatmul.bf16.gmra.mxu0 %v637
        %v679 = vpop.f32.mrf.mxu0
        %v680 = vadd.f32 %v581, %v679
        %v681 = vpop.f32.mrf.mxu0
        %v682 = vadd.f32 %v583, %v681
        %683 = vmatmul.bf16.gmra.mxu0 %v639
        %v684 = vpop.f32.mrf.mxu0
        %v685 = vadd.f32 %v586, %v684
        %v686 = vpop.f32.mrf.mxu0
        %v687 = vadd.f32 %v588, %v686
        %688 = vmatmul.bf16.gmra.mxu0 %v641
        %v689 = vpop.f32.mrf.mxu0
        %v690 = vadd.f32 %v591, %v689
        %v691 = vpop.f32.mrf.mxu0
        %v692 = vadd.f32 %v593, %v691
        %693 = vmatmul.bf16.gmra.mxu0 %v643
        %v694 = vpop.f32.mrf.mxu0
        %v695 = vadd.f32 %v596, %v694
        %v696 = vpop.f32.mrf.mxu0
        %v697 = vadd.f32 %v598, %v696
        %698 = vmatmul.bf16.gmra.mxu0 %v645
        %v699 = vpop.f32.mrf.mxu0
        %v700 = vadd.f32 %v601, %v699
        %v701 = vpop.f32.mrf.mxu0
        %v702 = vadd.f32 %v603, %v701
        %703 = vmatmul.bf16.gmra.mxu0 %v647
        %v704 = vpop.f32.mrf.mxu0
        %v705 = vadd.f32 %v606, %v704
        %v706 = vpop.f32.mrf.mxu0
        %v707 = vadd.f32 %v608, %v706
        %708 = vmatmul.bf16.gmra.mxu0 %v649
        %v709 = vpop.f32.mrf.mxu0
        %v710 = vadd.f32 %v611, %v709
        %v711 = vpop.f32.mrf.mxu0
        %v712 = vadd.f32 %v613, %v711
        %713 = vmatmul.bf16.gmra.mxu0 %v651
        %v714 = vpop.f32.mrf.mxu0
        %v715 = vadd.f32 %v616, %v714
        %v716 = vpop.f32.mrf.mxu0
        %v717 = vadd.f32 %v618, %v716
        %718 = vmatmul.bf16.gmra.mxu0 %v653
        %v719 = vpop.f32.mrf.mxu0
        %v720 = vadd.f32 %v621, %v719
        %v721 = vpop.f32.mrf.mxu0
        %v722 = vadd.f32 %v623, %v721
        %723 = vdwg.mxu0
        %s724 = scalar_lea.vmem %s281, 16
        %v725 = vld [vmem:[%s724] sm:$0xf]
        %v726 = vld [vmem:[%s724 + $0x4] sm:$0xf]
        %vm727 = vcmask 1046528
        %v728 = vrot.slane %v399, 1
        %v729 = vrot.slane %v400, 1
        %v730 = vsel %vm727, %v728, %v729
        %v731 = vrot.slane %v401, 1
        %v732 = vsel %vm727, %v729, %v731
        %v733 = vrot.slane %v402, 1
        %v734 = vsel %vm727, %v731, %v733
        %v735 = vrot.slane %v403, 1
        %v736 = vsel %vm727, %v733, %v735
        %v737 = vrot.slane %v404, 1
        %v738 = vsel %vm727, %v735, %v737
        %v739 = vrot.slane %v405, 1
        %v740 = vsel %vm727, %v737, %v739
        %v741 = vrot.slane %v406, 1
        %v742 = vsel %vm727, %v739, %v741
        %v743 = vrot.slane %v407, 1
        %v744 = vsel %vm727, %v741, %v743
        %v745 = vrot.slane %v408, 1
        %v746 = vsel %vm727, %v743, %v745
        %v747 = vrot.slane %v409, 1
        %v748 = vsel %vm727, %v745, %v747
        %v749 = vrot.slane %v410, 1
        %v750 = vsel %vm727, %v747, %v749
        %v751 = vrot.slane %v411, 1
        %v752 = vsel %vm727, %v749, %v751
        %v755 = vunpack.c.l.b16 %v725
        %v756 = vunpack.c.l.b16 %v726
        %v757 = vpack.c.b16 %v756, %v755
        %v760 = vsel %vm519, %v730, 0
        %v763 = vsel %vm519, %v732, 0
        %v766 = vsel %vm519, %v734, 0
        %v769 = vsel %vm519, %v736, 0
        %v772 = vsel %vm519, %v738, 0
        %v775 = vsel %vm519, %v740, 0
        %v778 = vsel %vm519, %v742, 0
        %v781 = vsel %vm519, %v744, 0
        %v784 = vsel %vm519, %v746, 0
        %v787 = vsel %vm519, %v748, 0
        %v790 = vsel %vm519, %v750, 0
        %v793 = vsel %vm519, %v752, 0
        %795 = vmatpush.bf16.msra.mxu0 0
        %796 = vmatpush.bf16.msra.mxu0 0
        %797 = vmatpush.bf16.msra.mxu0 0
        %798 = vmatpush.bf16.msra.mxu0 0
        %799 = vmatpush.bf16.msra.mxu0 0
        %800 = vmatpush.bf16.msra.mxu0 0
        %801 = vmatpush.bf16.msra.mxu0 0
        %802 = vmatpush.bf16.msra.mxu0 %v757
        %803 = vmatmul.bf16.gmra.mxu0 %v760
        %v804 = vpop.f32.mrf.mxu0
        %v805 = vadd.f32 0.0, %v804
        %v806 = vpop.f32.mrf.mxu0
        %v807 = vadd.f32 0.0, %v806
        %808 = vmatmul.bf16.gmra.mxu0 %v763
        %v809 = vpop.f32.mrf.mxu0
        %v810 = vadd.f32 0.0, %v809
        %v811 = vpop.f32.mrf.mxu0
        %v812 = vadd.f32 0.0, %v811
        %813 = vmatmul.bf16.gmra.mxu0 %v766
        %v814 = vpop.f32.mrf.mxu0
        %v815 = vadd.f32 0.0, %v814
        %v816 = vpop.f32.mrf.mxu0
        %v817 = vadd.f32 0.0, %v816
        %818 = vmatmul.bf16.gmra.mxu0 %v769
        %v819 = vpop.f32.mrf.mxu0
        %v820 = vadd.f32 0.0, %v819
        %v821 = vpop.f32.mrf.mxu0
        %v822 = vadd.f32 0.0, %v821
        %823 = vmatmul.bf16.gmra.mxu0 %v772
        %v824 = vpop.f32.mrf.mxu0
        %v825 = vadd.f32 0.0, %v824
        %v826 = vpop.f32.mrf.mxu0
        %v827 = vadd.f32 0.0, %v826
        %828 = vmatmul.bf16.gmra.mxu0 %v775
        %v829 = vpop.f32.mrf.mxu0
        %v830 = vadd.f32 0.0, %v829
        %v831 = vpop.f32.mrf.mxu0
        %v832 = vadd.f32 0.0, %v831
        %833 = vmatmul.bf16.gmra.mxu0 %v778
        %v834 = vpop.f32.mrf.mxu0
        %v835 = vadd.f32 0.0, %v834
        %v836 = vpop.f32.mrf.mxu0
        %v837 = vadd.f32 0.0, %v836
        %838 = vmatmul.bf16.gmra.mxu0 %v781
        %v839 = vpop.f32.mrf.mxu0
        %v840 = vadd.f32 0.0, %v839
        %v841 = vpop.f32.mrf.mxu0
        %v842 = vadd.f32 0.0, %v841
        %843 = vmatmul.bf16.gmra.mxu0 %v784
        %v844 = vpop.f32.mrf.mxu0
        %v845 = vadd.f32 0.0, %v844
        %v846 = vpop.f32.mrf.mxu0
        %v847 = vadd.f32 0.0, %v846
        %848 = vmatmul.bf16.gmra.mxu0 %v787
        %v849 = vpop.f32.mrf.mxu0
        %v850 = vadd.f32 0.0, %v849
        %v851 = vpop.f32.mrf.mxu0
        %v852 = vadd.f32 0.0, %v851
        %853 = vmatmul.bf16.gmra.mxu0 %v790
        %v854 = vpop.f32.mrf.mxu0
        %v855 = vadd.f32 0.0, %v854
        %v856 = vpop.f32.mrf.mxu0
        %v857 = vadd.f32 0.0, %v856
        %858 = vmatmul.bf16.gmra.mxu0 %v793
        %v859 = vpop.f32.mrf.mxu0
        %v860 = vadd.f32 0.0, %v859
        %v861 = vpop.f32.mrf.mxu0
        %v862 = vadd.f32 0.0, %v861
        %863 = vdwg.mxu0
        %v864 = vadd.f32 %v665, %v805
        %v865 = vadd.f32 %v667, %v807
        %v866 = vadd.f32 %v670, %v810
        %v867 = vadd.f32 %v672, %v812
        %v868 = vadd.f32 %v675, %v815
        %v869 = vadd.f32 %v677, %v817
        %v870 = vadd.f32 %v680, %v820
        %v871 = vadd.f32 %v682, %v822
        %v872 = vadd.f32 %v685, %v825
        %v873 = vadd.f32 %v687, %v827
        %v874 = vadd.f32 %v690, %v830
        %v875 = vadd.f32 %v692, %v832
        %v876 = vadd.f32 %v695, %v835
        %v877 = vadd.f32 %v697, %v837
        %v878 = vadd.f32 %v700, %v840
        %v879 = vadd.f32 %v702, %v842
        %v880 = vadd.f32 %v705, %v845
        %v881 = vadd.f32 %v707, %v847
        %v882 = vadd.f32 %v710, %v850
        %v883 = vadd.f32 %v712, %v852
        %v884 = vadd.f32 %v715, %v855
        %v885 = vadd.f32 %v717, %v857
        %v886 = vadd.f32 %v720, %v860
        %v887 = vadd.f32 %v722, %v862
        %v888 = vld [vmem:[#allocation2] sm:$0xff]
        %v889 = vld [vmem:[#allocation2 + $0x8] sm:$0xff]
        %v890 = vld [vmem:[#allocation2 + $0x10] sm:$0xff]
        %v891 = vld [vmem:[#allocation2 + $0x18] sm:$0xff]
        %v892 = vld [vmem:[#allocation2 + $0x20] sm:$0xff]
        %v893 = vld [vmem:[#allocation2 + $0x28] sm:$0xff]
        %v894 = vld [vmem:[#allocation2 + $0x30] sm:$0xff]
        %v895 = vld [vmem:[#allocation2 + $0x38] sm:$0xff]
        %v896 = vld [vmem:[#allocation2 + $0x40] sm:$0xff]
        %v897 = vld [vmem:[#allocation2 + $0x48] sm:$0xff]
        %v898 = vld [vmem:[#allocation2 + $0x50] sm:$0xff]
        %v899 = vld [vmem:[#allocation2 + $0x58] sm:$0xff]
        %v900 = vld [vmem:[#allocation2 + $0x60] sm:$0xff]
        %v901 = vld [vmem:[#allocation2 + $0x68] sm:$0xff]
        %v902 = vld [vmem:[#allocation2 + $0x70] sm:$0xff]
        %v903 = vld [vmem:[#allocation2 + $0x78] sm:$0xff]
        %v904 = vld [vmem:[#allocation2 + $0x80] sm:$0xff]
        %v905 = vld [vmem:[#allocation2 + $0x88] sm:$0xff]
        %v906 = vld [vmem:[#allocation2 + $0x90] sm:$0xff]
        %v907 = vld [vmem:[#allocation2 + $0x98] sm:$0xff]
        %v908 = vld [vmem:[#allocation2 + $0xa0] sm:$0xff]
        %v909 = vld [vmem:[#allocation2 + $0xa8] sm:$0xff]
        %v910 = vld [vmem:[#allocation2 + $0xb0] sm:$0xff]
        %v911 = vld [vmem:[#allocation2 + $0xb8] sm:$0xff]
        %v912 = vadd.f32 %v888, %v864
        %v913 = vadd.f32 %v889, %v865
        %v914 = vadd.f32 %v890, %v866
        %v915 = vadd.f32 %v891, %v867
        %v916 = vadd.f32 %v892, %v868
        %v917 = vadd.f32 %v893, %v869
        %v918 = vadd.f32 %v894, %v870
        %v919 = vadd.f32 %v895, %v871
        %v920 = vadd.f32 %v896, %v872
        %v921 = vadd.f32 %v897, %v873
        %v922 = vadd.f32 %v898, %v874
        %v923 = vadd.f32 %v899, %v875
        %v924 = vadd.f32 %v900, %v876
        %v925 = vadd.f32 %v901, %v877
        %v926 = vadd.f32 %v902, %v878
        %v927 = vadd.f32 %v903, %v879
        %v928 = vadd.f32 %v904, %v880
        %v929 = vadd.f32 %v905, %v881
        %v930 = vadd.f32 %v906, %v882
        %v931 = vadd.f32 %v907, %v883
        %v932 = vadd.f32 %v908, %v884
        %v933 = vadd.f32 %v909, %v885
        %v934 = vadd.f32 %v910, %v886
        %v935 = vadd.f32 %v911, %v887
        %vm936 = vcmask 523264
        %937 = vst.msk [vmem:[#allocation2] sm:$0xff] %vm936, %v912
        %938 = vst.msk [vmem:[#allocation2 + $0x8] sm:$0xff] %vm936, %v913
        %939 = vst.msk [vmem:[#allocation2 + $0x10] sm:$0xff] %vm936, %v914
        %940 = vst.msk [vmem:[#allocation2 + $0x18] sm:$0xff] %vm936, %v915
        %941 = vst.msk [vmem:[#allocation2 + $0x20] sm:$0xff] %vm936, %v916
        %942 = vst.msk [vmem:[#allocation2 + $0x28] sm:$0xff] %vm936, %v917
        %943 = vst.msk [vmem:[#allocation2 + $0x30] sm:$0xff] %vm936, %v918
        %944 = vst.msk [vmem:[#allocation2 + $0x38] sm:$0xff] %vm936, %v919
        %945 = vst.msk [vmem:[#allocation2 + $0x40] sm:$0xff] %vm936, %v920
        %946 = vst.msk [vmem:[#allocation2 + $0x48] sm:$0xff] %vm936, %v921
        %947 = vst.msk [vmem:[#allocation2 + $0x50] sm:$0xff] %vm936, %v922
        %948 = vst.msk [vmem:[#allocation2 + $0x58] sm:$0xff] %vm936, %v923
        %949 = vst.msk [vmem:[#allocation2 + $0x60] sm:$0xff] %vm936, %v924
        %950 = vst.msk [vmem:[#allocation2 + $0x68] sm:$0xff] %vm936, %v925
        %951 = vst.msk [vmem:[#allocation2 + $0x70] sm:$0xff] %vm936, %v926
        %952 = vst.msk [vmem:[#allocation2 + $0x78] sm:$0xff] %vm936, %v927
        %953 = vst.msk [vmem:[#allocation2 + $0x80] sm:$0xff] %vm936, %v928
        %954 = vst.msk [vmem:[#allocation2 + $0x88] sm:$0xff] %vm936, %v929
        %955 = vst.msk [vmem:[#allocation2 + $0x90] sm:$0xff] %vm936, %v930
        %956 = vst.msk [vmem:[#allocation2 + $0x98] sm:$0xff] %vm936, %v931
        %957 = vst.msk [vmem:[#allocation2 + $0xa0] sm:$0xff] %vm936, %v932
        %958 = vst.msk [vmem:[#allocation2 + $0xa8] sm:$0xff] %vm936, %v933
        %959 = vst.msk [vmem:[#allocation2 + $0xb0] sm:$0xff] %vm936, %v934
        %960 = vst.msk [vmem:[#allocation2 + $0xb8] sm:$0xff] %vm936, %v935
        %s961 = scalar_lea.vmem %s273, 24
        %v962 = vld [vmem:[%s961] sm:$0xf]
        %v963 = vld [vmem:[%s961 + $0x4] sm:$0xf]
        %v964 = vld [vmem:[%s961 + $0x8] sm:$0xf]
        %v965 = vld [vmem:[%s961 + $0xc] sm:$0xf]
        %v966 = vld [vmem:[%s961 + $0x10] sm:$0xf]
        %v967 = vld [vmem:[%s961 + $0x14] sm:$0xf]
        %v968 = vld [vmem:[%s961 + $0x18] sm:$0xf]
        %v969 = vld [vmem:[%s961 + $0x1c] sm:$0xf]
        %v970 = vld [vmem:[%s961 + $0x20] sm:$0xf]
        %v971 = vld [vmem:[%s961 + $0x24] sm:$0xf]
        %v972 = vld [vmem:[%s961 + $0x28] sm:$0xf]
        %v973 = vld [vmem:[%s961 + $0x2c] sm:$0xf]
        %v974 = vld [vmem:[%s961 + $0x30] sm:$0xf]
        %v975 = vld [vmem:[%s961 + $0x34] sm:$0xf]
        %v976 = vld [vmem:[%s961 + $0x38] sm:$0xf]
        %v977 = vld [vmem:[%s961 + $0x3c] sm:$0xf]
        %v978 = vld [vmem:[%s961 + $0x40] sm:$0xf]
        %v979 = vld [vmem:[%s961 + $0x44] sm:$0xf]
        %v980 = vld [vmem:[%s961 + $0x48] sm:$0xf]
        %v981 = vld [vmem:[%s961 + $0x4c] sm:$0xf]
        %v982 = vld [vmem:[%s961 + $0x50] sm:$0xf]
        %v983 = vld [vmem:[%s961 + $0x54] sm:$0xf]
        %v984 = vld [vmem:[%s961 + $0x58] sm:$0xf]
        %v985 = vld [vmem:[%s961 + $0x5c] sm:$0xf]
        %v986 = vld [vmem:[%s961 + $0x60] sm:$0xf]
        %s987 = scalar_lea.vmem %s281, 24
        %v988 = vld [vmem:[%s987] sm:$0xf]
        %v989 = vld [vmem:[%s987 + $0x4] sm:$0xf]
        %s990 = scalar_lea.vmem %s281, 32
        %v991 = vld [vmem:[%s990] sm:$0xf]
        %v992 = vld [vmem:[%s990 + $0x4] sm:$0xf]
        %v1018 = vunpack.c.l.b16 %v962
        %v1019 = vunpack.c.l.b16 %v963
        %v1020 = vunpack.c.l.b16 %v964
        %v1021 = vunpack.c.l.b16 %v965
        %v1022 = vunpack.c.l.b16 %v966
        %v1023 = vunpack.c.l.b16 %v967
        %v1024 = vunpack.c.l.b16 %v968
        %v1025 = vunpack.c.l.b16 %v969
        %v1026 = vunpack.c.l.b16 %v970
        %v1027 = vunpack.c.l.b16 %v971
        %v1028 = vunpack.c.l.b16 %v972
        %v1029 = vunpack.c.l.b16 %v973
        %v1030 = vunpack.c.l.b16 %v974
        %v1031 = vunpack.c.l.b16 %v975
        %v1032 = vunpack.c.l.b16 %v976
        %v1033 = vunpack.c.l.b16 %v977
        %v1034 = vunpack.c.l.b16 %v978
        %v1035 = vunpack.c.l.b16 %v979
        %v1036 = vunpack.c.l.b16 %v980
        %v1037 = vunpack.c.l.b16 %v981
        %v1038 = vunpack.c.l.b16 %v982
        %v1039 = vunpack.c.l.b16 %v983
        %v1040 = vunpack.c.l.b16 %v984
        %v1041 = vunpack.c.l.b16 %v985
        %v1042 = vunpack.c.l.b16 %v986
        %v1043 = vpack.c.b16 %v1019, %v1018
        %v1044 = vpack.c.b16 %v1021, %v1020
        %v1045 = vpack.c.b16 %v1023, %v1022
        %v1046 = vpack.c.b16 %v1025, %v1024
        %v1047 = vpack.c.b16 %v1027, %v1026
        %v1048 = vpack.c.b16 %v1029, %v1028
        %v1049 = vpack.c.b16 %v1031, %v1030
        %v1050 = vpack.c.b16 %v1033, %v1032
        %v1051 = vpack.c.b16 %v1035, %v1034
        %v1052 = vpack.c.b16 %v1037, %v1036
        %v1053 = vpack.c.b16 %v1039, %v1038
        %v1054 = vpack.c.b16 %v1041, %v1040
        %v1055 = vpack.c.b16 %v1042, %v1042
        %v1057 = vshrl.u32 %v1043, 16
        %v1059 = vshll.u32 %v1043, 16
        %v1061 = vrot.slane %v1059, 1
        %v1062 = vor.u32 %v1057, %v1061
        %v1064 = vshll.u32 %v1044, 16
        %v1066 = vrot.slane %v1064, 1
        %v1067 = vsel %vm412, %v1062, %v1066
        %v1068 = vshrl.u32 %v1044, 16
        %v1070 = vor.u32 %v1068, %v1066
        %v1072 = vshll.u32 %v1045, 16
        %v1074 = vrot.slane %v1072, 1
        %v1075 = vsel %vm412, %v1070, %v1074
        %v1076 = vshrl.u32 %v1045, 16
        %v1078 = vor.u32 %v1076, %v1074
        %v1080 = vshll.u32 %v1046, 16
        %v1082 = vrot.slane %v1080, 1
        %v1083 = vsel %vm412, %v1078, %v1082
        %v1084 = vshrl.u32 %v1046, 16
        %v1086 = vor.u32 %v1084, %v1082
        %v1088 = vshll.u32 %v1047, 16
        %v1090 = vrot.slane %v1088, 1
        %v1091 = vsel %vm412, %v1086, %v1090
        %v1092 = vshrl.u32 %v1047, 16
        %v1094 = vor.u32 %v1092, %v1090
        %v1096 = vshll.u32 %v1048, 16
        %v1098 = vrot.slane %v1096, 1
        %v1099 = vsel %vm412, %v1094, %v1098
        %v1100 = vshrl.u32 %v1048, 16
        %v1102 = vor.u32 %v1100, %v1098
        %v1104 = vshll.u32 %v1049, 16
        %v1106 = vrot.slane %v1104, 1
        %v1107 = vsel %vm412, %v1102, %v1106
        %v1108 = vshrl.u32 %v1049, 16
        %v1110 = vor.u32 %v1108, %v1106
        %v1112 = vshll.u32 %v1050, 16
        %v1114 = vrot.slane %v1112, 1
        %v1115 = vsel %vm412, %v1110, %v1114
        %v1116 = vshrl.u32 %v1050, 16
        %v1118 = vor.u32 %v1116, %v1114
        %v1120 = vshll.u32 %v1051, 16
        %v1122 = vrot.slane %v1120, 1
        %v1123 = vsel %vm412, %v1118, %v1122
        %v1124 = vshrl.u32 %v1051, 16
        %v1126 = vor.u32 %v1124, %v1122
        %v1128 = vshll.u32 %v1052, 16
        %v1130 = vrot.slane %v1128, 1
        %v1131 = vsel %vm412, %v1126, %v1130
        %v1132 = vshrl.u32 %v1052, 16
        %v1134 = vor.u32 %v1132, %v1130
        %v1136 = vshll.u32 %v1053, 16
        %v1138 = vrot.slane %v1136, 1
        %v1139 = vsel %vm412, %v1134, %v1138
        %v1140 = vshrl.u32 %v1053, 16
        %v1142 = vor.u32 %v1140, %v1138
        %v1144 = vshll.u32 %v1054, 16
        %v1146 = vrot.slane %v1144, 1
        %v1147 = vsel %vm412, %v1142, %v1146
        %v1148 = vshrl.u32 %v1054, 16
        %v1150 = vor.u32 %v1148, %v1146
        %v1152 = vshll.u32 %v1055, 16
        %v1154 = vrot.slane %v1152, 1
        %v1155 = vsel %vm412, %v1150, %v1154
        %v1158 = vunpack.c.l.b16 %v991
        %v1159 = vunpack.c.l.b16 %v992
        %v1160 = vpack.c.b16 %v1159, %v1158
        %v1163 = vsel %vm519, %v1067, 0
        %v1166 = vsel %vm519, %v1075, 0
        %v1169 = vsel %vm519, %v1083, 0
        %v1172 = vsel %vm519, %v1091, 0
        %v1175 = vsel %vm519, %v1099, 0
        %v1178 = vsel %vm519, %v1107, 0
        %v1181 = vsel %vm519, %v1115, 0
        %v1184 = vsel %vm519, %v1123, 0
        %v1187 = vsel %vm519, %v1131, 0
        %v1190 = vsel %vm519, %v1139, 0
        %v1193 = vsel %vm519, %v1147, 0
        %v1196 = vsel %vm519, %v1155, 0
        %1198 = vmatpush.bf16.msra.mxu0 0
        %1199 = vmatpush.bf16.msra.mxu0 0
        %1200 = vmatpush.bf16.msra.mxu0 0
        %1201 = vmatpush.bf16.msra.mxu0 0
        %1202 = vmatpush.bf16.msra.mxu0 0
        %1203 = vmatpush.bf16.msra.mxu0 0
        %1204 = vmatpush.bf16.msra.mxu0 0
        %1205 = vmatpush.bf16.msra.mxu0 %v1160
        %1206 = vmatmul.bf16.gmra.mxu0 %v1163
        %v1207 = vpop.f32.mrf.mxu0
        %v1208 = vadd.f32 0.0, %v1207
        %v1209 = vpop.f32.mrf.mxu0
        %v1210 = vadd.f32 0.0, %v1209
        %1211 = vmatmul.bf16.gmra.mxu0 %v1166
        %v1212 = vpop.f32.mrf.mxu0
        %v1213 = vadd.f32 0.0, %v1212
        %v1214 = vpop.f32.mrf.mxu0
        %v1215 = vadd.f32 0.0, %v1214
        %1216 = vmatmul.bf16.gmra.mxu0 %v1169
        %v1217 = vpop.f32.mrf.mxu0
        %v1218 = vadd.f32 0.0, %v1217
        %v1219 = vpop.f32.mrf.mxu0
        %v1220 = vadd.f32 0.0, %v1219
        %1221 = vmatmul.bf16.gmra.mxu0 %v1172
        %v1222 = vpop.f32.mrf.mxu0
        %v1223 = vadd.f32 0.0, %v1222
        %v1224 = vpop.f32.mrf.mxu0
        %v1225 = vadd.f32 0.0, %v1224
        %1226 = vmatmul.bf16.gmra.mxu0 %v1175
        %v1227 = vpop.f32.mrf.mxu0
        %v1228 = vadd.f32 0.0, %v1227
        %v1229 = vpop.f32.mrf.mxu0
        %v1230 = vadd.f32 0.0, %v1229
        %1231 = vmatmul.bf16.gmra.mxu0 %v1178
        %v1232 = vpop.f32.mrf.mxu0
        %v1233 = vadd.f32 0.0, %v1232
        %v1234 = vpop.f32.mrf.mxu0
        %v1235 = vadd.f32 0.0, %v1234
        %1236 = vmatmul.bf16.gmra.mxu0 %v1181
        %v1237 = vpop.f32.mrf.mxu0
        %v1238 = vadd.f32 0.0, %v1237
        %v1239 = vpop.f32.mrf.mxu0
        %v1240 = vadd.f32 0.0, %v1239
        %1241 = vmatmul.bf16.gmra.mxu0 %v1184
        %v1242 = vpop.f32.mrf.mxu0
        %v1243 = vadd.f32 0.0, %v1242
        %v1244 = vpop.f32.mrf.mxu0
        %v1245 = vadd.f32 0.0, %v1244
        %1246 = vmatmul.bf16.gmra.mxu0 %v1187
        %v1247 = vpop.f32.mrf.mxu0
        %v1248 = vadd.f32 0.0, %v1247
        %v1249 = vpop.f32.mrf.mxu0
        %v1250 = vadd.f32 0.0, %v1249
        %1251 = vmatmul.bf16.gmra.mxu0 %v1190
        %v1252 = vpop.f32.mrf.mxu0
        %v1253 = vadd.f32 0.0, %v1252
        %v1254 = vpop.f32.mrf.mxu0
        %v1255 = vadd.f32 0.0, %v1254
        %1256 = vmatmul.bf16.gmra.mxu0 %v1193
        %v1257 = vpop.f32.mrf.mxu0
        %v1258 = vadd.f32 0.0, %v1257
        %v1259 = vpop.f32.mrf.mxu0
        %v1260 = vadd.f32 0.0, %v1259
        %1261 = vmatmul.bf16.gmra.mxu0 %v1196
        %v1262 = vpop.f32.mrf.mxu0
        %v1263 = vadd.f32 0.0, %v1262
        %v1264 = vpop.f32.mrf.mxu0
        %v1265 = vadd.f32 0.0, %v1264
        %1266 = vdwg.mxu0
        %v1269 = vunpack.c.l.b16 %v988
        %v1270 = vunpack.c.l.b16 %v989
        %v1271 = vpack.c.b16 %v1270, %v1269
        %v1273 = vsel %vm519, %v1043, 0
        %v1275 = vsel %vm519, %v1044, 0
        %v1277 = vsel %vm519, %v1045, 0
        %v1279 = vsel %vm519, %v1046, 0
        %v1281 = vsel %vm519, %v1047, 0
        %v1283 = vsel %vm519, %v1048, 0
        %v1285 = vsel %vm519, %v1049, 0
        %v1287 = vsel %vm519, %v1050, 0
        %v1289 = vsel %vm519, %v1051, 0
        %v1291 = vsel %vm519, %v1052, 0
        %v1293 = vsel %vm519, %v1053, 0
        %v1295 = vsel %vm519, %v1054, 0
        %1297 = vmatpush.bf16.msra.mxu0 0
        %1298 = vmatpush.bf16.msra.mxu0 0
        %1299 = vmatpush.bf16.msra.mxu0 0
        %1300 = vmatpush.bf16.msra.mxu0 0
        %1301 = vmatpush.bf16.msra.mxu0 0
        %1302 = vmatpush.bf16.msra.mxu0 0
        %1303 = vmatpush.bf16.msra.mxu0 0
        %1304 = vmatpush.bf16.msra.mxu0 %v1271
        %1305 = vmatmul.bf16.gmra.mxu0 %v1273
        %v1306 = vpop.f32.mrf.mxu0
        %v1307 = vadd.f32 %v1208, %v1306
        %v1308 = vpop.f32.mrf.mxu0
        %v1309 = vadd.f32 %v1210, %v1308
        %1310 = vmatmul.bf16.gmra.mxu0 %v1275
        %v1311 = vpop.f32.mrf.mxu0
        %v1312 = vadd.f32 %v1213, %v1311
        %v1313 = vpop.f32.mrf.mxu0
        %v1314 = vadd.f32 %v1215, %v1313
        %1315 = vmatmul.bf16.gmra.mxu0 %v1277
        %v1316 = vpop.f32.mrf.mxu0
        %v1317 = vadd.f32 %v1218, %v1316
        %v1318 = vpop.f32.mrf.mxu0
        %v1319 = vadd.f32 %v1220, %v1318
        %1320 = vmatmul.bf16.gmra.mxu0 %v1279
        %v1321 = vpop.f32.mrf.mxu0
        %v1322 = vadd.f32 %v1223, %v1321
        %v1323 = vpop.f32.mrf.mxu0
        %v1324 = vadd.f32 %v1225, %v1323
        %1325 = vmatmul.bf16.gmra.mxu0 %v1281
        %v1326 = vpop.f32.mrf.mxu0
        %v1327 = vadd.f32 %v1228, %v1326
        %v1328 = vpop.f32.mrf.mxu0
        %v1329 = vadd.f32 %v1230, %v1328
        %1330 = vmatmul.bf16.gmra.mxu0 %v1283
        %v1331 = vpop.f32.mrf.mxu0
        %v1332 = vadd.f32 %v1233, %v1331
        %v1333 = vpop.f32.mrf.mxu0
        %v1334 = vadd.f32 %v1235, %v1333
        %1335 = vmatmul.bf16.gmra.mxu0 %v1285
        %v1336 = vpop.f32.mrf.mxu0
        %v1337 = vadd.f32 %v1238, %v1336
        %v1338 = vpop.f32.mrf.mxu0
        %v1339 = vadd.f32 %v1240, %v1338
        %1340 = vmatmul.bf16.gmra.mxu0 %v1287
        %v1341 = vpop.f32.mrf.mxu0
        %v1342 = vadd.f32 %v1243, %v1341
        %v1343 = vpop.f32.mrf.mxu0
        %v1344 = vadd.f32 %v1245, %v1343
        %1345 = vmatmul.bf16.gmra.mxu0 %v1289
        %v1346 = vpop.f32.mrf.mxu0
        %v1347 = vadd.f32 %v1248, %v1346
        %v1348 = vpop.f32.mrf.mxu0
        %v1349 = vadd.f32 %v1250, %v1348
        %1350 = vmatmul.bf16.gmra.mxu0 %v1291
        %v1351 = vpop.f32.mrf.mxu0
        %v1352 = vadd.f32 %v1253, %v1351
        %v1353 = vpop.f32.mrf.mxu0
        %v1354 = vadd.f32 %v1255, %v1353
        %1355 = vmatmul.bf16.gmra.mxu0 %v1293
        %v1356 = vpop.f32.mrf.mxu0
        %v1357 = vadd.f32 %v1258, %v1356
        %v1358 = vpop.f32.mrf.mxu0
        %v1359 = vadd.f32 %v1260, %v1358
        %1360 = vmatmul.bf16.gmra.mxu0 %v1295
        %v1361 = vpop.f32.mrf.mxu0
        %v1362 = vadd.f32 %v1263, %v1361
        %v1363 = vpop.f32.mrf.mxu0
        %v1364 = vadd.f32 %v1265, %v1363
        %1365 = vdwg.mxu0
        %s1366 = scalar_lea.vmem %s281, 40
        %v1367 = vld [vmem:[%s1366] sm:$0xf]
        %v1368 = vld [vmem:[%s1366 + $0x4] sm:$0xf]
        %v1369 = vrot.slane %v1043, 1
        %v1370 = vrot.slane %v1044, 1
        %v1371 = vsel %vm727, %v1369, %v1370
        %v1372 = vrot.slane %v1045, 1
        %v1373 = vsel %vm727, %v1370, %v1372
        %v1374 = vrot.slane %v1046, 1
        %v1375 = vsel %vm727, %v1372, %v1374
        %v1376 = vrot.slane %v1047, 1
        %v1377 = vsel %vm727, %v1374, %v1376
        %v1378 = vrot.slane %v1048, 1
        %v1379 = vsel %vm727, %v1376, %v1378
        %v1380 = vrot.slane %v1049, 1
        %v1381 = vsel %vm727, %v1378, %v1380
        %v1382 = vrot.slane %v1050, 1
        %v1383 = vsel %vm727, %v1380, %v1382
        %v1384 = vrot.slane %v1051, 1
        %v1385 = vsel %vm727, %v1382, %v1384
        %v1386 = vrot.slane %v1052, 1
        %v1387 = vsel %vm727, %v1384, %v1386
        %v1388 = vrot.slane %v1053, 1
        %v1389 = vsel %vm727, %v1386, %v1388
        %v1390 = vrot.slane %v1054, 1
        %v1391 = vsel %vm727, %v1388, %v1390
        %v1392 = vrot.slane %v1055, 1
        %v1393 = vsel %vm727, %v1390, %v1392
        %v1396 = vunpack.c.l.b16 %v1367
        %v1397 = vunpack.c.l.b16 %v1368
        %v1398 = vpack.c.b16 %v1397, %v1396
        %v1401 = vsel %vm519, %v1371, 0
        %v1404 = vsel %vm519, %v1373, 0
        %v1407 = vsel %vm519, %v1375, 0
        %v1410 = vsel %vm519, %v1377, 0
        %v1413 = vsel %vm519, %v1379, 0
        %v1416 = vsel %vm519, %v1381, 0
        %v1419 = vsel %vm519, %v1383, 0
        %v1422 = vsel %vm519, %v1385, 0
        %v1425 = vsel %vm519, %v1387, 0
        %v1428 = vsel %vm519, %v1389, 0
        %v1431 = vsel %vm519, %v1391, 0
        %v1434 = vsel %vm519, %v1393, 0
        %1436 = vmatpush.bf16.msra.mxu0 0
        %1437 = vmatpush.bf16.msra.mxu0 0
        %1438 = vmatpush.bf16.msra.mxu0 0
        %1439 = vmatpush.bf16.msra.mxu0 0
        %1440 = vmatpush.bf16.msra.mxu0 0
        %1441 = vmatpush.bf16.msra.mxu0 0
        %1442 = vmatpush.bf16.msra.mxu0 0
        %1443 = vmatpush.bf16.msra.mxu0 %v1398
        %1444 = vmatmul.bf16.gmra.mxu0 %v1401
        %v1445 = vpop.f32.mrf.mxu0
        %v1446 = vadd.f32 0.0, %v1445
        %v1447 = vpop.f32.mrf.mxu0
        %v1448 = vadd.f32 0.0, %v1447
        %1449 = vmatmul.bf16.gmra.mxu0 %v1404
        %v1450 = vpop.f32.mrf.mxu0
        %v1451 = vadd.f32 0.0, %v1450
        %v1452 = vpop.f32.mrf.mxu0
        %v1453 = vadd.f32 0.0, %v1452
        %1454 = vmatmul.bf16.gmra.mxu0 %v1407
        %v1455 = vpop.f32.mrf.mxu0
        %v1456 = vadd.f32 0.0, %v1455
        %v1457 = vpop.f32.mrf.mxu0
        %v1458 = vadd.f32 0.0, %v1457
        %1459 = vmatmul.bf16.gmra.mxu0 %v1410
        %v1460 = vpop.f32.mrf.mxu0
        %v1461 = vadd.f32 0.0, %v1460
        %v1462 = vpop.f32.mrf.mxu0
        %v1463 = vadd.f32 0.0, %v1462
        %1464 = vmatmul.bf16.gmra.mxu0 %v1413
        %v1465 = vpop.f32.mrf.mxu0
        %v1466 = vadd.f32 0.0, %v1465
        %v1467 = vpop.f32.mrf.mxu0
        %v1468 = vadd.f32 0.0, %v1467
        %1469 = vmatmul.bf16.gmra.mxu0 %v1416
        %v1470 = vpop.f32.mrf.mxu0
        %v1471 = vadd.f32 0.0, %v1470
        %v1472 = vpop.f32.mrf.mxu0
        %v1473 = vadd.f32 0.0, %v1472
        %1474 = vmatmul.bf16.gmra.mxu0 %v1419
        %v1475 = vpop.f32.mrf.mxu0
        %v1476 = vadd.f32 0.0, %v1475
        %v1477 = vpop.f32.mrf.mxu0
        %v1478 = vadd.f32 0.0, %v1477
        %1479 = vmatmul.bf16.gmra.mxu0 %v1422
        %v1480 = vpop.f32.mrf.mxu0
        %v1481 = vadd.f32 0.0, %v1480
        %v1482 = vpop.f32.mrf.mxu0
        %v1483 = vadd.f32 0.0, %v1482
        %1484 = vmatmul.bf16.gmra.mxu0 %v1425
        %v1485 = vpop.f32.mrf.mxu0
        %v1486 = vadd.f32 0.0, %v1485
        %v1487 = vpop.f32.mrf.mxu0
        %v1488 = vadd.f32 0.0, %v1487
        %1489 = vmatmul.bf16.gmra.mxu0 %v1428
        %v1490 = vpop.f32.mrf.mxu0
        %v1491 = vadd.f32 0.0, %v1490
        %v1492 = vpop.f32.mrf.mxu0
        %v1493 = vadd.f32 0.0, %v1492
        %1494 = vmatmul.bf16.gmra.mxu0 %v1431
        %v1495 = vpop.f32.mrf.mxu0
        %v1496 = vadd.f32 0.0, %v1495
        %v1497 = vpop.f32.mrf.mxu0
        %v1498 = vadd.f32 0.0, %v1497
        %1499 = vmatmul.bf16.gmra.mxu0 %v1434
        %v1500 = vpop.f32.mrf.mxu0
        %v1501 = vadd.f32 0.0, %v1500
        %v1502 = vpop.f32.mrf.mxu0
        %v1503 = vadd.f32 0.0, %v1502
        %1504 = vdwg.mxu0
        %v1505 = vadd.f32 %v1307, %v1446
        %v1506 = vadd.f32 %v1309, %v1448
        %v1507 = vadd.f32 %v1312, %v1451
        %v1508 = vadd.f32 %v1314, %v1453
        %v1509 = vadd.f32 %v1317, %v1456
        %v1510 = vadd.f32 %v1319, %v1458
        %v1511 = vadd.f32 %v1322, %v1461
        %v1512 = vadd.f32 %v1324, %v1463
        %v1513 = vadd.f32 %v1327, %v1466
        %v1514 = vadd.f32 %v1329, %v1468
        %v1515 = vadd.f32 %v1332, %v1471
        %v1516 = vadd.f32 %v1334, %v1473
        %v1517 = vadd.f32 %v1337, %v1476
        %v1518 = vadd.f32 %v1339, %v1478
        %v1519 = vadd.f32 %v1342, %v1481
        %v1520 = vadd.f32 %v1344, %v1483
        %v1521 = vadd.f32 %v1347, %v1486
        %v1522 = vadd.f32 %v1349, %v1488
        %v1523 = vadd.f32 %v1352, %v1491
        %v1524 = vadd.f32 %v1354, %v1493
        %v1525 = vadd.f32 %v1357, %v1496
        %v1526 = vadd.f32 %v1359, %v1498
        %v1527 = vadd.f32 %v1362, %v1501
        %v1528 = vadd.f32 %v1364, %v1503
        %v1529 = vld [vmem:[#allocation2] sm:$0xff]
        %v1530 = vld [vmem:[#allocation2 + $0x8] sm:$0xff]
        %v1531 = vld [vmem:[#allocation2 + $0x10] sm:$0xff]
        %v1532 = vld [vmem:[#allocation2 + $0x18] sm:$0xff]
        %v1533 = vld [vmem:[#allocation2 + $0x20] sm:$0xff]
        %v1534 = vld [vmem:[#allocation2 + $0x28] sm:$0xff]
        %v1535 = vld [vmem:[#allocation2 + $0x30] sm:$0xff]
        %v1536 = vld [vmem:[#allocation2 + $0x38] sm:$0xff]
        %v1537 = vld [vmem:[#allocation2 + $0x40] sm:$0xff]
        %v1538 = vld [vmem:[#allocation2 + $0x48] sm:$0xff]
        %v1539 = vld [vmem:[#allocation2 + $0x50] sm:$0xff]
        %v1540 = vld [vmem:[#allocation2 + $0x58] sm:$0xff]
        %v1541 = vld [vmem:[#allocation2 + $0x60] sm:$0xff]
        %v1542 = vld [vmem:[#allocation2 + $0x68] sm:$0xff]
        %v1543 = vld [vmem:[#allocation2 + $0x70] sm:$0xff]
        %v1544 = vld [vmem:[#allocation2 + $0x78] sm:$0xff]
        %v1545 = vld [vmem:[#allocation2 + $0x80] sm:$0xff]
        %v1546 = vld [vmem:[#allocation2 + $0x88] sm:$0xff]
        %v1547 = vld [vmem:[#allocation2 + $0x90] sm:$0xff]
        %v1548 = vld [vmem:[#allocation2 + $0x98] sm:$0xff]
        %v1549 = vld [vmem:[#allocation2 + $0xa0] sm:$0xff]
        %v1550 = vld [vmem:[#allocation2 + $0xa8] sm:$0xff]
        %v1551 = vld [vmem:[#allocation2 + $0xb0] sm:$0xff]
        %v1552 = vld [vmem:[#allocation2 + $0xb8] sm:$0xff]
        %v1553 = vadd.f32 %v1529, %v1505
        %v1554 = vadd.f32 %v1530, %v1506
        %v1555 = vadd.f32 %v1531, %v1507
        %v1556 = vadd.f32 %v1532, %v1508
        %v1557 = vadd.f32 %v1533, %v1509
        %v1558 = vadd.f32 %v1534, %v1510
        %v1559 = vadd.f32 %v1535, %v1511
        %v1560 = vadd.f32 %v1536, %v1512
        %v1561 = vadd.f32 %v1537, %v1513
        %v1562 = vadd.f32 %v1538, %v1514
        %v1563 = vadd.f32 %v1539, %v1515
        %v1564 = vadd.f32 %v1540, %v1516
        %v1565 = vadd.f32 %v1541, %v1517
        %v1566 = vadd.f32 %v1542, %v1518
        %v1567 = vadd.f32 %v1543, %v1519
        %v1568 = vadd.f32 %v1544, %v1520
        %v1569 = vadd.f32 %v1545, %v1521
        %v1570 = vadd.f32 %v1546, %v1522
        %v1571 = vadd.f32 %v1547, %v1523
        %v1572 = vadd.f32 %v1548, %v1524
        %v1573 = vadd.f32 %v1549, %v1525
        %v1574 = vadd.f32 %v1550, %v1526
        %v1575 = vadd.f32 %v1551, %v1527
        %v1576 = vadd.f32 %v1552, %v1528
        %1577 = vst.msk [vmem:[#allocation2] sm:$0xff] %vm936, %v1553
        %1578 = vst.msk [vmem:[#allocation2 + $0x8] sm:$0xff] %vm936, %v1554
        %1579 = vst.msk [vmem:[#allocation2 + $0x10] sm:$0xff] %vm936, %v1555
        %1580 = vst.msk [vmem:[#allocation2 + $0x18] sm:$0xff] %vm936, %v1556
        %1581 = vst.msk [vmem:[#allocation2 + $0x20] sm:$0xff] %vm936, %v1557
        %1582 = vst.msk [vmem:[#allocation2 + $0x28] sm:$0xff] %vm936, %v1558
        %1583 = vst.msk [vmem:[#allocation2 + $0x30] sm:$0xff] %vm936, %v1559
        %1584 = vst.msk [vmem:[#allocation2 + $0x38] sm:$0xff] %vm936, %v1560
        %1585 = vst.msk [vmem:[#allocation2 + $0x40] sm:$0xff] %vm936, %v1561
        %1586 = vst.msk [vmem:[#allocation2 + $0x48] sm:$0xff] %vm936, %v1562
        %1587 = vst.msk [vmem:[#allocation2 + $0x50] sm:$0xff] %vm936, %v1563
        %1588 = vst.msk [vmem:[#allocation2 + $0x58] sm:$0xff] %vm936, %v1564
        %1589 = vst.msk [vmem:[#allocation2 + $0x60] sm:$0xff] %vm936, %v1565
        %1590 = vst.msk [vmem:[#allocation2 + $0x68] sm:$0xff] %vm936, %v1566
        %1591 = vst.msk [vmem:[#allocation2 + $0x70] sm:$0xff] %vm936, %v1567
        %1592 = vst.msk [vmem:[#allocation2 + $0x78] sm:$0xff] %vm936, %v1568
        %1593 = vst.msk [vmem:[#allocation2 + $0x80] sm:$0xff] %vm936, %v1569
        %1594 = vst.msk [vmem:[#allocation2 + $0x88] sm:$0xff] %vm936, %v1570
        %1595 = vst.msk [vmem:[#allocation2 + $0x90] sm:$0xff] %vm936, %v1571
        %1596 = vst.msk [vmem:[#allocation2 + $0x98] sm:$0xff] %vm936, %v1572
        %1597 = vst.msk [vmem:[#allocation2 + $0xa0] sm:$0xff] %vm936, %v1573
        %1598 = vst.msk [vmem:[#allocation2 + $0xa8] sm:$0xff] %vm936, %v1574
        %1599 = vst.msk [vmem:[#allocation2 + $0xb0] sm:$0xff] %vm936, %v1575
        %1600 = vst.msk [vmem:[#allocation2 + $0xb8] sm:$0xff] %vm936, %v1576
        %s1601 = scalar_lea.vmem %s273, 48
        %v1602 = vld [vmem:[%s1601] sm:$0xf]
        %v1603 = vld [vmem:[%s1601 + $0x4] sm:$0xf]
        %v1604 = vld [vmem:[%s1601 + $0x8] sm:$0xf]
        %v1605 = vld [vmem:[%s1601 + $0xc] sm:$0xf]
        %v1606 = vld [vmem:[%s1601 + $0x10] sm:$0xf]
        %v1607 = vld [vmem:[%s1601 + $0x14] sm:$0xf]
        %v1608 = vld [vmem:[%s1601 + $0x18] sm:$0xf]
        %v1609 = vld [vmem:[%s1601 + $0x1c] sm:$0xf]
        %v1610 = vld [vmem:[%s1601 + $0x20] sm:$0xf]
        %v1611 = vld [vmem:[%s1601 + $0x24] sm:$0xf]
        %v1612 = vld [vmem:[%s1601 + $0x28] sm:$0xf]
        %v1613 = vld [vmem:[%s1601 + $0x2c] sm:$0xf]
        %v1614 = vld [vmem:[%s1601 + $0x30] sm:$0xf]
        %v1615 = vld [vmem:[%s1601 + $0x34] sm:$0xf]
        %v1616 = vld [vmem:[%s1601 + $0x38] sm:$0xf]
        %v1617 = vld [vmem:[%s1601 + $0x3c] sm:$0xf]
        %v1618 = vld [vmem:[%s1601 + $0x40] sm:$0xf]
        %v1619 = vld [vmem:[%s1601 + $0x44] sm:$0xf]
        %v1620 = vld [vmem:[%s1601 + $0x48] sm:$0xf]
        %v1621 = vld [vmem:[%s1601 + $0x4c] sm:$0xf]
        %v1622 = vld [vmem:[%s1601 + $0x50] sm:$0xf]
        %v1623 = vld [vmem:[%s1601 + $0x54] sm:$0xf]
        %v1624 = vld [vmem:[%s1601 + $0x58] sm:$0xf]
        %v1625 = vld [vmem:[%s1601 + $0x5c] sm:$0xf]
        %v1626 = vld [vmem:[%s1601 + $0x60] sm:$0xf]
        %s1627 = scalar_lea.vmem %s281, 48
        %v1628 = vld [vmem:[%s1627] sm:$0xf]
        %v1629 = vld [vmem:[%s1627 + $0x4] sm:$0xf]
        %s1630 = scalar_lea.vmem %s281, 56
        %v1631 = vld [vmem:[%s1630] sm:$0xf]
        %v1632 = vld [vmem:[%s1630 + $0x4] sm:$0xf]
        %v1658 = vunpack.c.l.b16 %v1602
        %v1659 = vunpack.c.l.b16 %v1603
        %v1660 = vunpack.c.l.b16 %v1604
        %v1661 = vunpack.c.l.b16 %v1605
        %v1662 = vunpack.c.l.b16 %v1606
        %v1663 = vunpack.c.l.b16 %v1607
        %v1664 = vunpack.c.l.b16 %v1608
        %v1665 = vunpack.c.l.b16 %v1609
        %v1666 = vunpack.c.l.b16 %v1610
        %v1667 = vunpack.c.l.b16 %v1611
        %v1668 = vunpack.c.l.b16 %v1612
        %v1669 = vunpack.c.l.b16 %v1613
        %v1670 = vunpack.c.l.b16 %v1614
        %v1671 = vunpack.c.l.b16 %v1615
        %v1672 = vunpack.c.l.b16 %v1616
        %v1673 = vunpack.c.l.b16 %v1617
        %v1674 = vunpack.c.l.b16 %v1618
        %v1675 = vunpack.c.l.b16 %v1619
        %v1676 = vunpack.c.l.b16 %v1620
        %v1677 = vunpack.c.l.b16 %v1621
        %v1678 = vunpack.c.l.b16 %v1622
        %v1679 = vunpack.c.l.b16 %v1623
        %v1680 = vunpack.c.l.b16 %v1624
        %v1681 = vunpack.c.l.b16 %v1625
        %v1682 = vunpack.c.l.b16 %v1626
        %v1683 = vpack.c.b16 %v1659, %v1658
        %v1684 = vpack.c.b16 %v1661, %v1660
        %v1685 = vpack.c.b16 %v1663, %v1662
        %v1686 = vpack.c.b16 %v1665, %v1664
        %v1687 = vpack.c.b16 %v1667, %v1666
        %v1688 = vpack.c.b16 %v1669, %v1668
        %v1689 = vpack.c.b16 %v1671, %v1670
        %v1690 = vpack.c.b16 %v1673, %v1672
        %v1691 = vpack.c.b16 %v1675, %v1674
        %v1692 = vpack.c.b16 %v1677, %v1676
        %v1693 = vpack.c.b16 %v1679, %v1678
        %v1694 = vpack.c.b16 %v1681, %v1680
        %v1695 = vpack.c.b16 %v1682, %v1682
        %v1697 = vshrl.u32 %v1683, 16
        %v1699 = vshll.u32 %v1683, 16
        %v1701 = vrot.slane %v1699, 1
        %v1702 = vor.u32 %v1697, %v1701
        %v1704 = vshll.u32 %v1684, 16
        %v1706 = vrot.slane %v1704, 1
        %v1707 = vsel %vm412, %v1702, %v1706
        %v1708 = vshrl.u32 %v1684, 16
        %v1710 = vor.u32 %v1708, %v1706
        %v1712 = vshll.u32 %v1685, 16
        %v1714 = vrot.slane %v1712, 1
        %v1715 = vsel %vm412, %v1710, %v1714
        %v1716 = vshrl.u32 %v1685, 16
        %v1718 = vor.u32 %v1716, %v1714
        %v1720 = vshll.u32 %v1686, 16
        %v1722 = vrot.slane %v1720, 1
        %v1723 = vsel %vm412, %v1718, %v1722
        %v1724 = vshrl.u32 %v1686, 16
        %v1726 = vor.u32 %v1724, %v1722
        %v1728 = vshll.u32 %v1687, 16
        %v1730 = vrot.slane %v1728, 1
        %v1731 = vsel %vm412, %v1726, %v1730
        %v1732 = vshrl.u32 %v1687, 16
        %v1734 = vor.u32 %v1732, %v1730
        %v1736 = vshll.u32 %v1688, 16
        %v1738 = vrot.slane %v1736, 1
        %v1739 = vsel %vm412, %v1734, %v1738
        %v1740 = vshrl.u32 %v1688, 16
        %v1742 = vor.u32 %v1740, %v1738
        %v1744 = vshll.u32 %v1689, 16
        %v1746 = vrot.slane %v1744, 1
        %v1747 = vsel %vm412, %v1742, %v1746
        %v1748 = vshrl.u32 %v1689, 16
        %v1750 = vor.u32 %v1748, %v1746
        %v1752 = vshll.u32 %v1690, 16
        %v1754 = vrot.slane %v1752, 1
        %v1755 = vsel %vm412, %v1750, %v1754
        %v1756 = vshrl.u32 %v1690, 16
        %v1758 = vor.u32 %v1756, %v1754
        %v1760 = vshll.u32 %v1691, 16
        %v1762 = vrot.slane %v1760, 1
        %v1763 = vsel %vm412, %v1758, %v1762
        %v1764 = vshrl.u32 %v1691, 16
        %v1766 = vor.u32 %v1764, %v1762
        %v1768 = vshll.u32 %v1692, 16
        %v1770 = vrot.slane %v1768, 1
        %v1771 = vsel %vm412, %v1766, %v1770
        %v1772 = vshrl.u32 %v1692, 16
        %v1774 = vor.u32 %v1772, %v1770
        %v1776 = vshll.u32 %v1693, 16
        %v1778 = vrot.slane %v1776, 1
        %v1779 = vsel %vm412, %v1774, %v1778
        %v1780 = vshrl.u32 %v1693, 16
        %v1782 = vor.u32 %v1780, %v1778
        %v1784 = vshll.u32 %v1694, 16
        %v1786 = vrot.slane %v1784, 1
        %v1787 = vsel %vm412, %v1782, %v1786
        %v1788 = vshrl.u32 %v1694, 16
        %v1790 = vor.u32 %v1788, %v1786
        %v1792 = vshll.u32 %v1695, 16
        %v1794 = vrot.slane %v1792, 1
        %v1795 = vsel %vm412, %v1790, %v1794
        %v1798 = vunpack.c.l.b16 %v1631
        %v1799 = vunpack.c.l.b16 %v1632
        %v1800 = vpack.c.b16 %v1799, %v1798
        %v1803 = vsel %vm519, %v1707, 0
        %v1806 = vsel %vm519, %v1715, 0
        %v1809 = vsel %vm519, %v1723, 0
        %v1812 = vsel %vm519, %v1731, 0
        %v1815 = vsel %vm519, %v1739, 0
        %v1818 = vsel %vm519, %v1747, 0
        %v1821 = vsel %vm519, %v1755, 0
        %v1824 = vsel %vm519, %v1763, 0
        %v1827 = vsel %vm519, %v1771, 0
        %v1830 = vsel %vm519, %v1779, 0
        %v1833 = vsel %vm519, %v1787, 0
        %v1836 = vsel %vm519, %v1795, 0
        %1838 = vmatpush.bf16.msra.mxu0 0
        %1839 = vmatpush.bf16.msra.mxu0 0
        %1840 = vmatpush.bf16.msra.mxu0 0
        %1841 = vmatpush.bf16.msra.mxu0 0
        %1842 = vmatpush.bf16.msra.mxu0 0
        %1843 = vmatpush.bf16.msra.mxu0 0
        %1844 = vmatpush.bf16.msra.mxu0 0
        %1845 = vmatpush.bf16.msra.mxu0 %v1800
        %1846 = vmatmul.bf16.gmra.mxu0 %v1803
        %v1847 = vpop.f32.mrf.mxu0
        %v1848 = vadd.f32 0.0, %v1847
        %v1849 = vpop.f32.mrf.mxu0
        %v1850 = vadd.f32 0.0, %v1849
        %1851 = vmatmul.bf16.gmra.mxu0 %v1806
        %v1852 = vpop.f32.mrf.mxu0
        %v1853 = vadd.f32 0.0, %v1852
        %v1854 = vpop.f32.mrf.mxu0
        %v1855 = vadd.f32 0.0, %v1854
        %1856 = vmatmul.bf16.gmra.mxu0 %v1809
        %v1857 = vpop.f32.mrf.mxu0
        %v1858 = vadd.f32 0.0, %v1857
        %v1859 = vpop.f32.mrf.mxu0
        %v1860 = vadd.f32 0.0, %v1859
        %1861 = vmatmul.bf16.gmra.mxu0 %v1812
        %v1862 = vpop.f32.mrf.mxu0
        %v1863 = vadd.f32 0.0, %v1862
        %v1864 = vpop.f32.mrf.mxu0
        %v1865 = vadd.f32 0.0, %v1864
        %1866 = vmatmul.bf16.gmra.mxu0 %v1815
        %v1867 = vpop.f32.mrf.mxu0
        %v1868 = vadd.f32 0.0, %v1867
        %v1869 = vpop.f32.mrf.mxu0
        %v1870 = vadd.f32 0.0, %v1869
        %1871 = vmatmul.bf16.gmra.mxu0 %v1818
        %v1872 = vpop.f32.mrf.mxu0
        %v1873 = vadd.f32 0.0, %v1872
        %v1874 = vpop.f32.mrf.mxu0
        %v1875 = vadd.f32 0.0, %v1874
        %1876 = vmatmul.bf16.gmra.mxu0 %v1821
        %v1877 = vpop.f32.mrf.mxu0
        %v1878 = vadd.f32 0.0, %v1877
        %v1879 = vpop.f32.mrf.mxu0
        %v1880 = vadd.f32 0.0, %v1879
        %1881 = vmatmul.bf16.gmra.mxu0 %v1824
        %v1882 = vpop.f32.mrf.mxu0
        %v1883 = vadd.f32 0.0, %v1882
        %v1884 = vpop.f32.mrf.mxu0
        %v1885 = vadd.f32 0.0, %v1884
        %1886 = vmatmul.bf16.gmra.mxu0 %v1827
        %v1887 = vpop.f32.mrf.mxu0
        %v1888 = vadd.f32 0.0, %v1887
        %v1889 = vpop.f32.mrf.mxu0
        %v1890 = vadd.f32 0.0, %v1889
        %1891 = vmatmul.bf16.gmra.mxu0 %v1830
        %v1892 = vpop.f32.mrf.mxu0
        %v1893 = vadd.f32 0.0, %v1892
        %v1894 = vpop.f32.mrf.mxu0
        %v1895 = vadd.f32 0.0, %v1894
        %1896 = vmatmul.bf16.gmra.mxu0 %v1833
        %v1897 = vpop.f32.mrf.mxu0
        %v1898 = vadd.f32 0.0, %v1897
        %v1899 = vpop.f32.mrf.mxu0
        %v1900 = vadd.f32 0.0, %v1899
        %1901 = vmatmul.bf16.gmra.mxu0 %v1836
        %v1902 = vpop.f32.mrf.mxu0
        %v1903 = vadd.f32 0.0, %v1902
        %v1904 = vpop.f32.mrf.mxu0
        %v1905 = vadd.f32 0.0, %v1904
        %1906 = vdwg.mxu0
        %v1909 = vunpack.c.l.b16 %v1628
        %v1910 = vunpack.c.l.b16 %v1629
        %v1911 = vpack.c.b16 %v1910, %v1909
        %v1913 = vsel %vm519, %v1683, 0
        %v1915 = vsel %vm519, %v1684, 0
        %v1917 = vsel %vm519, %v1685, 0
        %v1919 = vsel %vm519, %v1686, 0
        %v1921 = vsel %vm519, %v1687, 0
        %v1923 = vsel %vm519, %v1688, 0
        %v1925 = vsel %vm519, %v1689, 0
        %v1927 = vsel %vm519, %v1690, 0
        %v1929 = vsel %vm519, %v1691, 0
        %v1931 = vsel %vm519, %v1692, 0
        %v1933 = vsel %vm519, %v1693, 0
        %v1935 = vsel %vm519, %v1694, 0
        %1937 = vmatpush.bf16.msra.mxu0 0
        %1938 = vmatpush.bf16.msra.mxu0 0
        %1939 = vmatpush.bf16.msra.mxu0 0
        %1940 = vmatpush.bf16.msra.mxu0 0
        %1941 = vmatpush.bf16.msra.mxu0 0
        %1942 = vmatpush.bf16.msra.mxu0 0
        %1943 = vmatpush.bf16.msra.mxu0 0
        %1944 = vmatpush.bf16.msra.mxu0 %v1911
        %1945 = vmatmul.bf16.gmra.mxu0 %v1913
        %v1946 = vpop.f32.mrf.mxu0
        %v1947 = vadd.f32 %v1848, %v1946
        %v1948 = vpop.f32.mrf.mxu0
        %v1949 = vadd.f32 %v1850, %v1948
        %1950 = vmatmul.bf16.gmra.mxu0 %v1915
        %v1951 = vpop.f32.mrf.mxu0
        %v1952 = vadd.f32 %v1853, %v1951
        %v1953 = vpop.f32.mrf.mxu0
        %v1954 = vadd.f32 %v1855, %v1953
        %1955 = vmatmul.bf16.gmra.mxu0 %v1917
        %v1956 = vpop.f32.mrf.mxu0
        %v1957 = vadd.f32 %v1858, %v1956
        %v1958 = vpop.f32.mrf.mxu0
        %v1959 = vadd.f32 %v1860, %v1958
        %1960 = vmatmul.bf16.gmra.mxu0 %v1919
        %v1961 = vpop.f32.mrf.mxu0
        %v1962 = vadd.f32 %v1863, %v1961
        %v1963 = vpop.f32.mrf.mxu0
        %v1964 = vadd.f32 %v1865, %v1963
        %1965 = vmatmul.bf16.gmra.mxu0 %v1921
        %v1966 = vpop.f32.mrf.mxu0
        %v1967 = vadd.f32 %v1868, %v1966
        %v1968 = vpop.f32.mrf.mxu0
        %v1969 = vadd.f32 %v1870, %v1968
        %1970 = vmatmul.bf16.gmra.mxu0 %v1923
        %v1971 = vpop.f32.mrf.mxu0
        %v1972 = vadd.f32 %v1873, %v1971
        %v1973 = vpop.f32.mrf.mxu0
        %v1974 = vadd.f32 %v1875, %v1973
        %1975 = vmatmul.bf16.gmra.mxu0 %v1925
        %v1976 = vpop.f32.mrf.mxu0
        %v1977 = vadd.f32 %v1878, %v1976
        %v1978 = vpop.f32.mrf.mxu0
        %v1979 = vadd.f32 %v1880, %v1978
        %1980 = vmatmul.bf16.gmra.mxu0 %v1927
        %v1981 = vpop.f32.mrf.mxu0
        %v1982 = vadd.f32 %v1883, %v1981
        %v1983 = vpop.f32.mrf.mxu0
        %v1984 = vadd.f32 %v1885, %v1983
        %1985 = vmatmul.bf16.gmra.mxu0 %v1929
        %v1986 = vpop.f32.mrf.mxu0
        %v1987 = vadd.f32 %v1888, %v1986
        %v1988 = vpop.f32.mrf.mxu0
        %v1989 = vadd.f32 %v1890, %v1988
        %1990 = vmatmul.bf16.gmra.mxu0 %v1931
        %v1991 = vpop.f32.mrf.mxu0
        %v1992 = vadd.f32 %v1893, %v1991
        %v1993 = vpop.f32.mrf.mxu0
        %v1994 = vadd.f32 %v1895, %v1993
        %1995 = vmatmul.bf16.gmra.mxu0 %v1933
        %v1996 = vpop.f32.mrf.mxu0
        %v1997 = vadd.f32 %v1898, %v1996
        %v1998 = vpop.f32.mrf.mxu0
        %v1999 = vadd.f32 %v1900, %v1998
        %2000 = vmatmul.bf16.gmra.mxu0 %v1935
        %v2001 = vpop.f32.mrf.mxu0
        %v2002 = vadd.f32 %v1903, %v2001
        %v2003 = vpop.f32.mrf.mxu0
        %v2004 = vadd.f32 %v1905, %v2003
        %2005 = vdwg.mxu0
        %s2006 = scalar_lea.vmem %s281, 64
        %v2007 = vld [vmem:[%s2006] sm:$0xf]
        %v2008 = vld [vmem:[%s2006 + $0x4] sm:$0xf]
        %v2009 = vrot.slane %v1683, 1
        %v2010 = vrot.slane %v1684, 1
        %v2011 = vsel %vm727, %v2009, %v2010
        %v2012 = vrot.slane %v1685, 1
        %v2013 = vsel %vm727, %v2010, %v2012
        %v2014 = vrot.slane %v1686, 1
        %v2015 = vsel %vm727, %v2012, %v2014
        %v2016 = vrot.slane %v1687, 1
        %v2017 = vsel %vm727, %v2014, %v2016
        %v2018 = vrot.slane %v1688, 1
        %v2019 = vsel %vm727, %v2016, %v2018
        %v2020 = vrot.slane %v1689, 1
        %v2021 = vsel %vm727, %v2018, %v2020
        %v2022 = vrot.slane %v1690, 1
        %v2023 = vsel %vm727, %v2020, %v2022
        %v2024 = vrot.slane %v1691, 1
        %v2025 = vsel %vm727, %v2022, %v2024
        %v2026 = vrot.slane %v1692, 1
        %v2027 = vsel %vm727, %v2024, %v2026
        %v2028 = vrot.slane %v1693, 1
        %v2029 = vsel %vm727, %v2026, %v2028
        %v2030 = vrot.slane %v1694, 1
        %v2031 = vsel %vm727, %v2028, %v2030
        %v2032 = vrot.slane %v1695, 1
        %v2033 = vsel %vm727, %v2030, %v2032
        %v2036 = vunpack.c.l.b16 %v2007
        %v2037 = vunpack.c.l.b16 %v2008
        %v2038 = vpack.c.b16 %v2037, %v2036
        %v2041 = vsel %vm519, %v2011, 0
        %v2044 = vsel %vm519, %v2013, 0
        %v2047 = vsel %vm519, %v2015, 0
        %v2050 = vsel %vm519, %v2017, 0
        %v2053 = vsel %vm519, %v2019, 0
        %v2056 = vsel %vm519, %v2021, 0
        %v2059 = vsel %vm519, %v2023, 0
        %v2062 = vsel %vm519, %v2025, 0
        %v2065 = vsel %vm519, %v2027, 0
        %v2068 = vsel %vm519, %v2029, 0
        %v2071 = vsel %vm519, %v2031, 0
        %v2074 = vsel %vm519, %v2033, 0
        %2076 = vmatpush.bf16.msra.mxu0 0
        %2077 = vmatpush.bf16.msra.mxu0 0
        %2078 = vmatpush.bf16.msra.mxu0 0
        %2079 = vmatpush.bf16.msra.mxu0 0
        %2080 = vmatpush.bf16.msra.mxu0 0
        %2081 = vmatpush.bf16.msra.mxu0 0
        %2082 = vmatpush.bf16.msra.mxu0 0
        %2083 = vmatpush.bf16.msra.mxu0 %v2038
        %2084 = vmatmul.bf16.gmra.mxu0 %v2041
        %v2085 = vpop.f32.mrf.mxu0
        %v2086 = vadd.f32 0.0, %v2085
        %v2087 = vpop.f32.mrf.mxu0
        %v2088 = vadd.f32 0.0, %v2087
        %2089 = vmatmul.bf16.gmra.mxu0 %v2044
        %v2090 = vpop.f32.mrf.mxu0
        %v2091 = vadd.f32 0.0, %v2090
        %v2092 = vpop.f32.mrf.mxu0
        %v2093 = vadd.f32 0.0, %v2092
        %2094 = vmatmul.bf16.gmra.mxu0 %v2047
        %v2095 = vpop.f32.mrf.mxu0
        %v2096 = vadd.f32 0.0, %v2095
        %v2097 = vpop.f32.mrf.mxu0
        %v2098 = vadd.f32 0.0, %v2097
        %2099 = vmatmul.bf16.gmra.mxu0 %v2050
        %v2100 = vpop.f32.mrf.mxu0
        %v2101 = vadd.f32 0.0, %v2100
        %v2102 = vpop.f32.mrf.mxu0
        %v2103 = vadd.f32 0.0, %v2102
        %2104 = vmatmul.bf16.gmra.mxu0 %v2053
        %v2105 = vpop.f32.mrf.mxu0
        %v2106 = vadd.f32 0.0, %v2105
        %v2107 = vpop.f32.mrf.mxu0
        %v2108 = vadd.f32 0.0, %v2107
        %2109 = vmatmul.bf16.gmra.mxu0 %v2056
        %v2110 = vpop.f32.mrf.mxu0
        %v2111 = vadd.f32 0.0, %v2110
        %v2112 = vpop.f32.mrf.mxu0
        %v2113 = vadd.f32 0.0, %v2112
        %2114 = vmatmul.bf16.gmra.mxu0 %v2059
        %v2115 = vpop.f32.mrf.mxu0
        %v2116 = vadd.f32 0.0, %v2115
        %v2117 = vpop.f32.mrf.mxu0
        %v2118 = vadd.f32 0.0, %v2117
        %2119 = vmatmul.bf16.gmra.mxu0 %v2062
        %v2120 = vpop.f32.mrf.mxu0
        %v2121 = vadd.f32 0.0, %v2120
        %v2122 = vpop.f32.mrf.mxu0
        %v2123 = vadd.f32 0.0, %v2122
        %2124 = vmatmul.bf16.gmra.mxu0 %v2065
        %v2125 = vpop.f32.mrf.mxu0
        %v2126 = vadd.f32 0.0, %v2125
        %v2127 = vpop.f32.mrf.mxu0
        %v2128 = vadd.f32 0.0, %v2127
        %2129 = vmatmul.bf16.gmra.mxu0 %v2068
        %v2130 = vpop.f32.mrf.mxu0
        %v2131 = vadd.f32 0.0, %v2130
        %v2132 = vpop.f32.mrf.mxu0
        %v2133 = vadd.f32 0.0, %v2132
        %2134 = vmatmul.bf16.gmra.mxu0 %v2071
        %v2135 = vpop.f32.mrf.mxu0
        %v2136 = vadd.f32 0.0, %v2135
        %v2137 = vpop.f32.mrf.mxu0
        %v2138 = vadd.f32 0.0, %v2137
        %2139 = vmatmul.bf16.gmra.mxu0 %v2074
        %v2140 = vpop.f32.mrf.mxu0
        %v2141 = vadd.f32 0.0, %v2140
        %v2142 = vpop.f32.mrf.mxu0
        %v2143 = vadd.f32 0.0, %v2142
        %2144 = vdwg.mxu0
        %v2145 = vadd.f32 %v1947, %v2086
        %v2146 = vadd.f32 %v1949, %v2088
        %v2147 = vadd.f32 %v1952, %v2091
        %v2148 = vadd.f32 %v1954, %v2093
        %v2149 = vadd.f32 %v1957, %v2096
        %v2150 = vadd.f32 %v1959, %v2098
        %v2151 = vadd.f32 %v1962, %v2101
        %v2152 = vadd.f32 %v1964, %v2103
        %v2153 = vadd.f32 %v1967, %v2106
        %v2154 = vadd.f32 %v1969, %v2108
        %v2155 = vadd.f32 %v1972, %v2111
        %v2156 = vadd.f32 %v1974, %v2113
        %v2157 = vadd.f32 %v1977, %v2116
        %v2158 = vadd.f32 %v1979, %v2118
        %v2159 = vadd.f32 %v1982, %v2121
        %v2160 = vadd.f32 %v1984, %v2123
        %v2161 = vadd.f32 %v1987, %v2126
        %v2162 = vadd.f32 %v1989, %v2128
        %v2163 = vadd.f32 %v1992, %v2131
        %v2164 = vadd.f32 %v1994, %v2133
        %v2165 = vadd.f32 %v1997, %v2136
        %v2166 = vadd.f32 %v1999, %v2138
        %v2167 = vadd.f32 %v2002, %v2141
        %v2168 = vadd.f32 %v2004, %v2143
        %v2169 = vld [vmem:[#allocation2] sm:$0xff]
        %v2170 = vld [vmem:[#allocation2 + $0x8] sm:$0xff]
        %v2171 = vld [vmem:[#allocation2 + $0x10] sm:$0xff]
        %v2172 = vld [vmem:[#allocation2 + $0x18] sm:$0xff]
        %v2173 = vld [vmem:[#allocation2 + $0x20] sm:$0xff]
        %v2174 = vld [vmem:[#allocation2 + $0x28] sm:$0xff]
        %v2175 = vld [vmem:[#allocation2 + $0x30] sm:$0xff]
        %v2176 = vld [vmem:[#allocation2 + $0x38] sm:$0xff]
        %v2177 = vld [vmem:[#allocation2 + $0x40] sm:$0xff]
        %v2178 = vld [vmem:[#allocation2 + $0x48] sm:$0xff]
        %v2179 = vld [vmem:[#allocation2 + $0x50] sm:$0xff]
        %v2180 = vld [vmem:[#allocation2 + $0x58] sm:$0xff]
        %v2181 = vld [vmem:[#allocation2 + $0x60] sm:$0xff]
        %v2182 = vld [vmem:[#allocation2 + $0x68] sm:$0xff]
        %v2183 = vld [vmem:[#allocation2 + $0x70] sm:$0xff]
        %v2184 = vld [vmem:[#allocation2 + $0x78] sm:$0xff]
        %v2185 = vld [vmem:[#allocation2 + $0x80] sm:$0xff]
        %v2186 = vld [vmem:[#allocation2 + $0x88] sm:$0xff]
        %v2187 = vld [vmem:[#allocation2 + $0x90] sm:$0xff]
        %v2188 = vld [vmem:[#allocation2 + $0x98] sm:$0xff]
        %v2189 = vld [vmem:[#allocation2 + $0xa0] sm:$0xff]
        %v2190 = vld [vmem:[#allocation2 + $0xa8] sm:$0xff]
        %v2191 = vld [vmem:[#allocation2 + $0xb0] sm:$0xff]
        %v2192 = vld [vmem:[#allocation2 + $0xb8] sm:$0xff]
        %v2193 = vadd.f32 %v2169, %v2145
        %v2194 = vadd.f32 %v2170, %v2146
        %v2195 = vadd.f32 %v2171, %v2147
        %v2196 = vadd.f32 %v2172, %v2148
        %v2197 = vadd.f32 %v2173, %v2149
        %v2198 = vadd.f32 %v2174, %v2150
        %v2199 = vadd.f32 %v2175, %v2151
        %v2200 = vadd.f32 %v2176, %v2152
        %v2201 = vadd.f32 %v2177, %v2153
        %v2202 = vadd.f32 %v2178, %v2154
        %v2203 = vadd.f32 %v2179, %v2155
        %v2204 = vadd.f32 %v2180, %v2156
        %v2205 = vadd.f32 %v2181, %v2157
        %v2206 = vadd.f32 %v2182, %v2158
        %v2207 = vadd.f32 %v2183, %v2159
        %v2208 = vadd.f32 %v2184, %v2160
        %v2209 = vadd.f32 %v2185, %v2161
        %v2210 = vadd.f32 %v2186, %v2162
        %v2211 = vadd.f32 %v2187, %v2163
        %v2212 = vadd.f32 %v2188, %v2164
        %v2213 = vadd.f32 %v2189, %v2165
        %v2214 = vadd.f32 %v2190, %v2166
        %v2215 = vadd.f32 %v2191, %v2167
        %v2216 = vadd.f32 %v2192, %v2168
        %2217 = vst.msk [vmem:[#allocation2] sm:$0xff] %vm936, %v2193
        %2218 = vst.msk [vmem:[#allocation2 + $0x8] sm:$0xff] %vm936, %v2194
        %2219 = vst.msk [vmem:[#allocation2 + $0x10] sm:$0xff] %vm936, %v2195
        %2220 = vst.msk [vmem:[#allocation2 + $0x18] sm:$0xff] %vm936, %v2196
        %2221 = vst.msk [vmem:[#allocation2 + $0x20] sm:$0xff] %vm936, %v2197
        %2222 = vst.msk [vmem:[#allocation2 + $0x28] sm:$0xff] %vm936, %v2198
        %2223 = vst.msk [vmem:[#allocation2 + $0x30] sm:$0xff] %vm936, %v2199
        %2224 = vst.msk [vmem:[#allocation2 + $0x38] sm:$0xff] %vm936, %v2200
        %2225 = vst.msk [vmem:[#allocation2 + $0x40] sm:$0xff] %vm936, %v2201
        %2226 = vst.msk [vmem:[#allocation2 + $0x48] sm:$0xff] %vm936, %v2202
        %2227 = vst.msk [vmem:[#allocation2 + $0x50] sm:$0xff] %vm936, %v2203
        %2228 = vst.msk [vmem:[#allocation2 + $0x58] sm:$0xff] %vm936, %v2204
        %2229 = vst.msk [vmem:[#allocation2 + $0x60] sm:$0xff] %vm936, %v2205
        %2230 = vst.msk [vmem:[#allocation2 + $0x68] sm:$0xff] %vm936, %v2206
        %2231 = vst.msk [vmem:[#allocation2 + $0x70] sm:$0xff] %vm936, %v2207
        %2232 = vst.msk [vmem:[#allocation2 + $0x78] sm:$0xff] %vm936, %v2208
        %2233 = vst.msk [vmem:[#allocation2 + $0x80] sm:$0xff] %vm936, %v2209
        %2234 = vst.msk [vmem:[#allocation2 + $0x88] sm:$0xff] %vm936, %v2210
        %2235 = vst.msk [vmem:[#allocation2 + $0x90] sm:$0xff] %vm936, %v2211
        %2236 = vst.msk [vmem:[#allocation2 + $0x98] sm:$0xff] %vm936, %v2212
        %2237 = vst.msk [vmem:[#allocation2 + $0xa0] sm:$0xff] %vm936, %v2213
        %2238 = vst.msk [vmem:[#allocation2 + $0xa8] sm:$0xff] %vm936, %v2214
        %2239 = vst.msk [vmem:[#allocation2 + $0xb0] sm:$0xff] %vm936, %v2215
        %2240 = vst.msk [vmem:[#allocation2 + $0xb8] sm:$0xff] %vm936, %v2216
        // Predicated region
        $region41: #{tpu_custom_call.1} parent=35 // pred_check
          %p2241 = pneg %p290
        $region42: #{tpu_custom_call.1} parent=35 // pred_check_branch
          %2243 = sbr.rel (%p2241) target = $region44
        $region43: #{tpu_custom_call.1} parent=35 // pred_region
          %v2244 = vld [vmem:[%s285] sm:$0x1]
          %v2245 = vld [vmem:[%s288] sm:$0x1]
          %v2246 = vld [vmem:[#allocation2] sm:$0xff]
          %v2247 = vld [vmem:[#allocation2 + $0x8] sm:$0xff]
          %v2248 = vld [vmem:[#allocation2 + $0x10] sm:$0xff]
          %v2249 = vld [vmem:[#allocation2 + $0x18] sm:$0xff]
          %v2250 = vld [vmem:[#allocation2 + $0x30] sm:$0xff]
          %v2251 = vld [vmem:[#allocation2 + $0x38] sm:$0xff]
          %v2252 = vld [vmem:[#allocation2 + $0x40] sm:$0xff]
          %v2253 = vld [vmem:[#allocation2 + $0x48] sm:$0xff]
          %v2254 = vld [vmem:[#allocation2 + $0x60] sm:$0xff]
          %v2255 = vld [vmem:[#allocation2 + $0x68] sm:$0xff]
          %v2256 = vld [vmem:[#allocation2 + $0x70] sm:$0xff]
          %v2257 = vld [vmem:[#allocation2 + $0x78] sm:$0xff]
          %v2258 = vld [vmem:[#allocation2 + $0x90] sm:$0xff]
          %v2259 = vld [vmem:[#allocation2 + $0x98] sm:$0xff]
          %v2260 = vld [vmem:[#allocation2 + $0xa0] sm:$0xff]
          %v2261 = vld [vmem:[#allocation2 + $0xa8] sm:$0xff]
          %v2263 = vperm.slane %v2244, 0
          %v2265 = vmul.f32 %v2246, %v2263
          %v2266 = vmul.f32 %v2247, %v2263
          %v2267 = vmul.f32 %v2248, %v2263
          %v2268 = vmul.f32 %v2249, %v2263
          %v2269 = vmul.f32 %v2250, %v2263
          %v2270 = vmul.f32 %v2251, %v2263
          %v2271 = vmul.f32 %v2252, %v2263
          %v2272 = vmul.f32 %v2253, %v2263
          %v2273 = vmul.f32 %v2254, %v2263
          %v2274 = vmul.f32 %v2255, %v2263
          %v2275 = vmul.f32 %v2256, %v2263
          %v2276 = vmul.f32 %v2257, %v2263
          %v2277 = vmul.f32 %v2258, %v2263
          %v2278 = vmul.f32 %v2259, %v2263
          %v2279 = vmul.f32 %v2260, %v2263
          %v2280 = vmul.f32 %v2261, %v2263
          %v2282 = vperm.slane %v2245, 0
          %v2284 = vadd.f32 %v2265, %v2282
          %v2285 = vadd.f32 %v2266, %v2282
          %v2286 = vadd.f32 %v2267, %v2282
          %v2287 = vadd.f32 %v2268, %v2282
          %v2288 = vadd.f32 %v2269, %v2282
          %v2289 = vadd.f32 %v2270, %v2282
          %v2290 = vadd.f32 %v2271, %v2282
          %v2291 = vadd.f32 %v2272, %v2282
          %v2292 = vadd.f32 %v2273, %v2282
          %v2293 = vadd.f32 %v2274, %v2282
          %v2294 = vadd.f32 %v2275, %v2282
          %v2295 = vadd.f32 %v2276, %v2282
          %v2296 = vadd.f32 %v2277, %v2282
          %v2297 = vadd.f32 %v2278, %v2282
          %v2298 = vadd.f32 %v2279, %v2282
          %v2299 = vadd.f32 %v2280, %v2282
          %v2300 = vmax.f32 %v2284, 0.0
          %v2301 = vmax.f32 %v2285, 0.0
          %v2302 = vmax.f32 %v2286, 0.0
          %v2303 = vmax.f32 %v2287, 0.0
          %v2304 = vmax.f32 %v2288, 0.0
          %v2305 = vmax.f32 %v2289, 0.0
          %v2306 = vmax.f32 %v2290, 0.0
          %v2307 = vmax.f32 %v2291, 0.0
          %v2308 = vmax.f32 %v2292, 0.0
          %v2309 = vmax.f32 %v2293, 0.0
          %v2310 = vmax.f32 %v2294, 0.0
          %v2311 = vmax.f32 %v2295, 0.0
          %v2312 = vmax.f32 %v2296, 0.0
          %v2313 = vmax.f32 %v2297, 0.0
          %v2314 = vmax.f32 %v2298, 0.0
          %v2315 = vmax.f32 %v2299, 0.0
          %v2316 = vpack.c.bf16 %v2300, %v2300
          %v2317 = vpack.c.bf16 %v2301, %v2301
          %v2318 = vpack.c.bf16 %v2302, %v2302
          %v2319 = vpack.c.bf16 %v2303, %v2303
          %v2320 = vpack.c.bf16 %v2304, %v2304
          %v2321 = vpack.c.bf16 %v2305, %v2305
          %v2322 = vpack.c.bf16 %v2306, %v2306
          %v2323 = vpack.c.bf16 %v2307, %v2307
          %v2324 = vpack.c.bf16 %v2308, %v2308
          %v2325 = vpack.c.bf16 %v2309, %v2309
          %v2326 = vpack.c.bf16 %v2310, %v2310
          %v2327 = vpack.c.bf16 %v2311, %v2311
          %v2328 = vpack.c.bf16 %v2312, %v2312
          %v2329 = vpack.c.bf16 %v2313, %v2313
          %v2330 = vpack.c.bf16 %v2314, %v2314
          %v2331 = vpack.c.bf16 %v2315, %v2315
          %vm2332 = vcmask 519168
          %2333 = vst.msk [vmem:[%s265] sm:$0xf] %vm2332, %v2316
          %2334 = vst.msk [vmem:[%s265 + $0x4] sm:$0xf] %vm2332, %v2317
          %2335 = vst.msk [vmem:[%s265 + $0x8] sm:$0xf] %vm2332, %v2318
          %2336 = vst.msk [vmem:[%s265 + $0xc] sm:$0xf] %vm2332, %v2319
          %2337 = vst.msk [vmem:[%s265 + $0x10] sm:$0xf] %vm2332, %v2320
          %2338 = vst.msk [vmem:[%s265 + $0x14] sm:$0xf] %vm2332, %v2321
          %2339 = vst.msk [vmem:[%s265 + $0x18] sm:$0xf] %vm2332, %v2322
          %2340 = vst.msk [vmem:[%s265 + $0x1c] sm:$0xf] %vm2332, %v2323
          %2341 = vst.msk [vmem:[%s265 + $0x20] sm:$0xf] %vm2332, %v2324
          %2342 = vst.msk [vmem:[%s265 + $0x24] sm:$0xf] %vm2332, %v2325
          %2343 = vst.msk [vmem:[%s265 + $0x28] sm:$0xf] %vm2332, %v2326
          %2344 = vst.msk [vmem:[%s265 + $0x2c] sm:$0xf] %vm2332, %v2327
          %2345 = vst.msk [vmem:[%s265 + $0x30] sm:$0xf] %vm2332, %v2328
          %2346 = vst.msk [vmem:[%s265 + $0x34] sm:$0xf] %vm2332, %v2329
          %2347 = vst.msk [vmem:[%s265 + $0x38] sm:$0xf] %vm2332, %v2330
          %2348 = vst.msk [vmem:[%s265 + $0x3c] sm:$0xf] %vm2332, %v2331
        $region44: #{tpu_custom_call.1} parent=35 // pred_fallthru
          _
        %s2349 = sand.u32 %s155, 1
        %s2350 = scalar_lea.sflag [#allocation4], %s2349
        %s2351 = sand.u32 %s155, 1
        %s2352 = smul.addr %s2351, 64
        %s2353 = scalar_lea.vmem [#allocation3], %s2352
        // Predicated region
        $region45: #{tpu_custom_call.1} parent=35 // pred_check
          %p2354 = pneg %p165
        $region46: #{tpu_custom_call.1} parent=35 // pred_check_branch
          %2356 = sbr.rel (%p2354) target = $region48
        $region47: #{tpu_custom_call.1} parent=35 // pred_region
          %2358 = vsyncadd %s2350, 0
          %s2359 = smul.addr %s23, 16
          %s2360 = sadd.s32 %s24, %s2359
          %s2361 = smul.addr %s2360, 4
          %s2362 = scalar_lea.hbm %s4, %s2361
          %s2363 = sshll.u32 %s2353, 4
          %s2364 = int_to_ptr.vmem [resolvable:$true] %s2363
          %s2365 = sshll.u32 %s2362, 4
          %s2366 = int_to_ptr.hbm [resolvable:$true] %s2365
          %2371 = dma.vmem_to_hbm [thread:$0]  %s2364, 1024, %s2366, %s2350, 64, 64, 4
        $region48: #{tpu_custom_call.1} parent=35 // pred_fallthru
          _
      $region36: #{tpu_custom_call.1} parent=5 // pred_fallthru
        _
      %p2372 = scmp.le.s32.totalorder 2, %s13
      // Predicated region
      $region49: #{tpu_custom_call.1} parent=5 // pred_check
        %p2373 = pneg %p2372
      $region50: #{tpu_custom_call.1} parent=5 // pred_check_branch
        %2375 = sbr.rel (%p2373) target = $region52
      $region51: #{tpu_custom_call.1} parent=5 // pred_region
        %s2376 = ssub.s32 %s13, 2
        // Predicated region
        $region53: #{tpu_custom_call.1} parent=51 // pred_check
          %p2377 = pneg %p171
        $region54: #{tpu_custom_call.1} parent=51 // pred_check_branch
          %2379 = sbr.rel (%p2377) target = $region56
        $region55: #{tpu_custom_call.1} parent=51 // pred_region
          %s2380 = sand.u32 %s156, 1
          %s2381 = scalar_lea.sflag [#allocation4], %s2380
          %s2382 = sand.u32 %s156, 1
          %s2383 = smul.addr %s2382, 64
          %s2384 = scalar_lea.vmem [#allocation3], %s2383
          %2386 = dma.done %s2381, 1024
        $region56: #{tpu_custom_call.1} parent=51 // pred_fallthru
          _
      $region52: #{tpu_custom_call.1} parent=5 // pred_fallthru
        _
    $region6: #{tpu_custom_call.1} parent=1 // loop_footer
      %s17 = sadd.s32 1, %s13
    $region7: #{tpu_custom_call.1} parent=1 // loop_footer_branch
      %12 = sbr.rel target = $region3
    $region8: #{tpu_custom_call.1} parent=1 // loop_exit
      _
    %2387 = vsyncpa [#allocation4], 1
    %s2388 = scalar_lea.sflag [#allocation4], 1
    %2389 = vsyncpa %s2388, 1

</llo_original>
